<compile_context>
chip_gen: v5e
topology: v5e:2x2
jax: 0.10.0
libtpu: 0.0.40
codegen_flags: <defaults>
</compile_context>

<pallas_src>
import jax
import jax.numpy as jnp
from jax.experimental import pallas as pl
from jax.experimental.pallas import tpu as pltpu

POOL_K = 72
POOL_S = 24
BN_EPS = 1e-5
C_PAD = 128      # lane-dense packed channel width: [audio | video | zero pad]
H1 = 512         # first hidden width per branch
H2 = 128         # second hidden width per branch


def _fused_kernel(x_ref, w1_ref, w2p_ref, misc_ref, o_ref):
    nc = o_ref.shape[-1]
    inv_k = 1.0 / POOL_K

    x = x_ref[...]                                              # (B, T, 128) f32
    # AvgPool1d(kernel=72, stride=24) -> exactly 2 overlapping windows.
    # Segment-sum trick: windows [0:72] and [24:96] share rows [24:72].
    s0 = jnp.sum(x[:, 0:POOL_S, :], axis=1)                     # rows [0, 24)
    s1 = jnp.sum(x[:, POOL_S:POOL_K, :], axis=1)                # rows [24, 72) (shared)
    s2 = jnp.sum(x[:, POOL_K:POOL_K + POOL_S, :], axis=1)       # rows [72, 96)
    p0 = (s0 + s1) * inv_k                                      # (B, 128) window 0
    p1 = (s1 + s2) * inv_k                                      # (B, 128) window 1

    # Both branches' first Linear fused into one matmul:
    #   [p0 | p1] (B, 256) @ W1_packed (256, 1024) -> cols 0:512 audio, 512:1024 video.
    # flatten(1) (channel, window) interleave is encoded by the even/odd row split
    # baked into W1_packed at fold time.
    pc = jnp.concatenate([p0, p1], axis=1).astype(jnp.bfloat16)
    h1 = jnp.dot(pc, w1_ref[...], preferred_element_type=jnp.float32)   # (B, 1024)

    sc1 = misc_ref[0:1, :]                                      # (1, 1024)
    sh1 = misc_ref[1:2, :]
    h1 = jnp.maximum(h1 * sc1 + sh1, 0.0)                       # BN1 + ReLU (Dropout = id)

    # Second Linear per branch (kept per-branch; block-diag would double bytes).
    h1b = h1.astype(jnp.bfloat16)
    h2a = jnp.dot(h1b[:, 0:H1], w2p_ref[0:H1, :],
                  preferred_element_type=jnp.float32)           # (B, 128) audio
    h2v = jnp.dot(h1b[:, H1:2 * H1], w2p_ref[H1:2 * H1, :],
                  preferred_element_type=jnp.float32)           # (B, 128) video
    h2 = jnp.concatenate([h2a, h2v], axis=1)                    # (B, 256) == cat(a, v)

    sc2 = misc_ref[2:3, 0:2 * H2]                               # (1, 256)
    sh2 = misc_ref[2:3, 2 * H2:4 * H2]
    e = jnp.maximum(h2 * sc2 + sh2, 0.0)                        # BN2 + ReLU (Dropout = id)

    # outputLayer: Linear(256, 128) then Linear(128, num_classes) (column-padded).
    b3 = misc_ref[2:3, 4 * H2:5 * H2]                           # (1, 128)
    h3 = jnp.dot(e.astype(jnp.bfloat16), w2p_ref[2 * H1:2 * H1 + 2 * H2, :],
                 preferred_element_type=jnp.float32) + b3       # (B, 128)

    b4 = misc_ref[2:3, 5 * H2:6 * H2]                           # (1, 128) zero-padded bias
    out = jnp.dot(h3.astype(jnp.bfloat16), w2p_ref[2 * H1 + 2 * H2:2 * H1 + 3 * H2, :],
                  preferred_element_type=jnp.float32) + b4      # (B, 128) cols >= nc are 0
    o_ref[...] = out[:, :nc].astype(o_ref.dtype)


def mean_av_divide_t_mid(audio_feat, video_feat, kp):
    """Fused forward. audio_feat: (B, T, A), video_feat: (B, T, V)."""
    B, T, A = audio_feat.shape
    V = video_feat.shape[-1]
    nc = kp["num_classes"]

    # Lane-dense packed activation: [audio | video | zero pad] -> 128 channels.
    pad = C_PAD - A - V
    x = jnp.concatenate(
        [audio_feat, video_feat, jnp.zeros((B, T, pad), audio_feat.dtype)], axis=-1)

    w1 = kp["w1_packed"]        # (256, 1024) bf16
    w2p = kp["w2_packed"]       # (1408, 128) bf16 : [w2_a | w2_v | w3 | w4_pad]
    misc = kp["misc"]           # (8, 1024) f32    : sc1 / sh1 / [sc2|sh2|b3|b4]

    flops = 2 * B * (2 * C_PAD * 2 * H1 + 2 * H1 * H2 + 2 * H2 * H2 + H2 * H2) \
        + B * T * C_PAD
    bytes_accessed = (x.size * 4 + w1.size * 2 + w2p.size * 2
                      + misc.size * 4 + B * nc * 4)

    vmem = pl.BlockSpec(memory_space=pltpu.MemorySpace.VMEM)
    return pl.pallas_call(
        _fused_kernel,
        out_shape=jax.ShapeDtypeStruct((B, nc), jnp.float32),
        in_specs=[vmem, vmem, vmem, vmem],
        out_specs=vmem,
        cost_estimate=pl.CostEstimate(flops=int(flops), transcendentals=0,
                                      bytes_accessed=int(bytes_accessed)),
    )(x, w1, w2p, misc)


# ---------------- parameter construction (deterministic, synthetic) ----------------

def _make_raw_params(key, audio_emb_dim, video_emb_dim, num_classes):
    keys = iter(jax.random.split(key, 64))
    nk = lambda: next(keys)

    def linear(fan_in, fan_out):
        w = jax.random.normal(nk(), (fan_in, fan_out), jnp.float32) / jnp.sqrt(float(fan_in))
        b = 0.01 * jax.random.normal(nk(), (fan_out,), jnp.float32)
        return w, b

    def bn(n):
        g = 1.0 + 0.1 * jax.random.normal(nk(), (n,), jnp.float32)
        be = 0.1 * jax.random.normal(nk(), (n,), jnp.float32)
        m = 0.05 * jax.random.normal(nk(), (n,), jnp.float32)
        v = 1.0 + 0.2 * jax.random.uniform(nk(), (n,), jnp.float32)
        return g, be, m, v

    def branch(emb_dim):
        w1, b1 = linear(2 * emb_dim, H1)
        g1, be1, m1, v1 = bn(H1)
        w2, b2 = linear(H1, H2)
        g2, be2, m2, v2 = bn(H2)
        return dict(w1=w1, b1=b1, g1=g1, be1=be1, m1=m1, v1=v1,
                    w2=w2, b2=b2, g2=g2, be2=be2, m2=m2, v2=v2)

    raw = {"a": branch(audio_emb_dim), "v": branch(video_emb_dim)}
    raw["w3"], raw["b3"] = linear(2 * H2, H2)
    raw["w4"], raw["b4"] = linear(H2, num_classes)
    return raw


def _fold_params(raw):
    """Fold Linear bias + BatchNorm (eval) into scale/shift and pack everything
    into 3 contiguous buffers (W1 bf16, W2|W3|W4 bf16, scale/shift/bias f32)."""
    a, v = raw["a"], raw["v"]
    A = a["w1"].shape[0] // 2
    V = v["w1"].shape[0] // 2
    nc = raw["w4"].shape[1]
    assert A + V <= C_PAD

    def bn_fold(g, be, m, var, b):
        sc = g / jnp.sqrt(var + BN_EPS)
        sh = be + (b - m) * sc
        return sc, sh

    a_sc1, a_sh1 = bn_fold(a["g1"], a["be1"], a["m1"], a["v1"], a["b1"])
    a_sc2, a_sh2 = bn_fold(a["g2"], a["be2"], a["m2"], a["v2"], a["b2"])
    v_sc1, v_sh1 = bn_fold(v["g1"], v["be1"], v["m1"], v["v1"], v["b1"])
    v_sc2, v_sh2 = bn_fold(v["g2"], v["be2"], v["m2"], v["v2"], v["b2"])

    # Combined first-layer weight. Rows = packed channel index (audio 0:A,
    # video A:A+V, zero pad to 128); even/odd weight rows (flatten(1)
    # interleave) stacked along the contraction dim for windows 0 and 1.
    def combined(sel):
        w = jnp.zeros((C_PAD, 2 * H1), jnp.float32)
        w = w.at[0:A, 0:H1].set(a["w1"][sel::2])
        w = w.at[A:A + V, H1:2 * H1].set(v["w1"][sel::2])
        return w
    w1_packed = jnp.concatenate([combined(0), combined(1)], axis=0).astype(jnp.bfloat16)

    # Row-stacked second-layer / output weights: [w2_a | w2_v | w3 | w4_pad].
    w4_pad = jnp.zeros((H2, H2), jnp.float32).at[:, :nc].set(raw["w4"])
    w2_packed = jnp.concatenate(
        [a["w2"], v["w2"], raw["w3"], w4_pad], axis=0).astype(jnp.bfloat16)   # (1408, 128)

    # Packed scale/shift/bias rows (f32).
    b4_pad = jnp.zeros((H2,), jnp.float32).at[:nc].set(raw["b4"])
    row2 = jnp.concatenate(
        [a_sc2, v_sc2, a_sh2, v_sh2, raw["b3"], b4_pad,
         jnp.zeros((2 * H1 - 6 * H2,), jnp.float32)])
    misc = jnp.zeros((8, 2 * H1), jnp.float32)
    misc = misc.at[0].set(jnp.concatenate([a_sc1, v_sc1]))
    misc = misc.at[1].set(jnp.concatenate([a_sh1, v_sh1]))
    misc = misc.at[2].set(row2)

    return {"w1_packed": w1_packed, "w2_packed": w2_packed, "misc": misc,
            "num_classes": int(nc)}


def _ref_forward(audio, video, raw):
    """Pure-JAX f32 reference mirroring the PyTorch module in eval mode."""
    def pool_flatten(x):
        p0 = jnp.mean(x[:, 0:POOL_K, :], axis=1)
        p1 = jnp.mean(x[:, POOL_S:POOL_S + POOL_K, :], axis=1)
        # (B, C, 2) flatten(1): channel-major, window-minor interleave.
        return jnp.stack([p0, p1], axis=-1).reshape(x.shape[0], -1)

    def branch(x, p):
        h = x @ p["w1"] + p["b1"]
        h = (h - p["m1"]) / jnp.sqrt(p["v1"] + BN_EPS) * p["g1"] + p["be1"]
        h = jnp.maximum(h, 0.0)
        h = h @ p["w2"] + p["b2"]
        h = (h - p["m2"]) / jnp.sqrt(p["v2"] + BN_EPS) * p["g2"] + p["be2"]
        return jnp.maximum(h, 0.0)

    a = branch(pool_flatten(audio), raw["a"])
    v = branch(pool_flatten(video), raw["v"])
    e = jnp.concatenate([a, v], axis=1)
    h = e @ raw["w3"] + raw["b3"]
    return h @ raw["w4"] + raw["b4"]


if __name__ == "__main__":
    B, T = 2, 96                       # T=96 -> AvgPool1d(72, 24) yields exactly 2 windows
    audio_emb_dim, video_emb_dim, num_classes = 64, 48, 8

    key = jax.random.PRNGKey(0)
    k_a, k_v, k_p = jax.random.split(key, 3)
    audio_feat = jax.random.normal(k_a, (B, T, audio_emb_dim), jnp.float32)
    video_feat = jax.random.normal(k_v, (B, T, video_emb_dim), jnp.float32)

    raw = _make_raw_params(k_p, audio_emb_dim, video_emb_dim, num_classes)
    kp = _fold_params(raw)

    out = mean_av_divide_t_mid(audio_feat, video_feat, kp)
    out = jax.block_until_ready(out)

    ref = _ref_forward(audio_feat, video_feat, raw)
    assert out.shape == (B, num_classes)
    # Tolerance loosened vs. the pure-f32 version: matmul weights/operands are
    # bf16 (f32 accumulate), so expect ~1e-3..1e-2 absolute deviation.
    assert jnp.allclose(out, ref, rtol=2e-2, atol=2e-2), (
        f"max abs err {jnp.max(jnp.abs(out - ref))}")
    print("KERNEL_OK")
</pallas_src>

<mosaic_0001>
module attributes {stable_mosaic.version = 11 : i64} {
  func.func @_fused_kernel(%arg0: memref<2x96x128xf32, #tpu.memory_space<vmem>>, %arg1: memref<256x1024xbf16, #tpu.memory_space<vmem>>, %arg2: memref<1408x128xbf16, #tpu.memory_space<vmem>>, %arg3: memref<8x1024xf32, #tpu.memory_space<vmem>>, %arg4: memref<2x8xf32, #tpu.memory_space<vmem>>) attributes {dimension_semantics = [], scalar_prefetch = 0 : i64, scratch_operands = 0 : i64, tpu.core_type = #tpu.core_type<tc>} {
    %c0 = arith.constant 0 : index
    %c0_0 = arith.constant 0 : index
    %c0_1 = arith.constant 0 : index
    %0 = vector.load %arg0[%c0, %c0_0, %c0_1] : memref<2x96x128xf32, #tpu.memory_space<vmem>>, vector<2x96x128xf32>
    %1 = vector.extract_strided_slice %0 {offsets = [0, 0, 0], sizes = [2, 24, 128], strides = [1, 1, 1]} : vector<2x96x128xf32> to vector<2x24x128xf32>
    %cst = arith.constant dense<0.000000e+00> : vector<2x128xf32>
    %2 = vector.multi_reduction <add>, %1, %cst [1] : vector<2x24x128xf32> to vector<2x128xf32>
    %3 = vector.extract_strided_slice %0 {offsets = [0, 24, 0], sizes = [2, 48, 128], strides = [1, 1, 1]} : vector<2x96x128xf32> to vector<2x48x128xf32>
    %cst_2 = arith.constant dense<0.000000e+00> : vector<2x128xf32>
    %4 = vector.multi_reduction <add>, %3, %cst_2 [1] : vector<2x48x128xf32> to vector<2x128xf32>
    %5 = vector.extract_strided_slice %0 {offsets = [0, 72, 0], sizes = [2, 24, 128], strides = [1, 1, 1]} : vector<2x96x128xf32> to vector<2x24x128xf32>
    %cst_3 = arith.constant dense<0.000000e+00> : vector<2x128xf32>
    %6 = vector.multi_reduction <add>, %5, %cst_3 [1] : vector<2x24x128xf32> to vector<2x128xf32>
    %7 = arith.addf %2, %4 : vector<2x128xf32>
    %cst_4 = arith.constant 0.013888889 : f32
    %8 = vector.broadcast %cst_4 : f32 to vector<2x128xf32>
    %9 = arith.mulf %7, %8 : vector<2x128xf32>
    %10 = arith.addf %4, %6 : vector<2x128xf32>
    %cst_5 = arith.constant 0.013888889 : f32
    %11 = vector.broadcast %cst_5 : f32 to vector<2x128xf32>
    %12 = arith.mulf %10, %11 : vector<2x128xf32>
    %13 = tpu.concatenate %9, %12 in 1 : vector<2x128xf32>, vector<2x128xf32> -> vector<2x256xf32>
    %14 = arith.truncf %13 : vector<2x256xf32> to vector<2x256xbf16>
    %c0_6 = arith.constant 0 : index
    %c0_7 = arith.constant 0 : index
    %15 = vector.load %arg1[%c0_6, %c0_7] : memref<256x1024xbf16, #tpu.memory_space<vmem>>, vector<256x1024xbf16>
    %cst_8 = arith.constant dense<0.000000e+00> : vector<2x1024xf32>
    %16 = tpu.matmul %14, %15, %cst_8 {dimension_numbers = #tpu.dot_dimension_numbers<[1], [0], [0], [1], [0, 0, 1, 1], [], []>} : vector<2x256xbf16>, vector<256x1024xbf16>, vector<2x1024xf32> -> vector<2x1024xf32>
    %c0_9 = arith.constant 0 : index
    %c0_10 = arith.constant 0 : index
    %17 = vector.load %arg3[%c0_9, %c0_10] : memref<8x1024xf32, #tpu.memory_space<vmem>>, vector<1x1024xf32>
    %c1 = arith.constant 1 : index
    %c0_11 = arith.constant 0 : index
    %18 = vector.load %arg3[%c1, %c0_11] : memref<8x1024xf32, #tpu.memory_space<vmem>>, vector<1x1024xf32>
    %19 = vector.broadcast %17 : vector<1x1024xf32> to vector<2x1024xf32>
    %20 = arith.mulf %16, %19 : vector<2x1024xf32>
    %21 = vector.broadcast %18 : vector<1x1024xf32> to vector<2x1024xf32>
    %22 = arith.addf %20, %21 : vector<2x1024xf32>
    %cst_12 = arith.constant 0.000000e+00 : f32
    %23 = vector.broadcast %cst_12 : f32 to vector<2x1024xf32>
    %24 = arith.maximumf %22, %23 : vector<2x1024xf32>
    %25 = arith.truncf %24 : vector<2x1024xf32> to vector<2x1024xbf16>
    %26 = vector.extract_strided_slice %25 {offsets = [0, 0], sizes = [2, 512], strides = [1, 1]} : vector<2x1024xbf16> to vector<2x512xbf16>
    %c0_13 = arith.constant 0 : index
    %c0_14 = arith.constant 0 : index
    %27 = vector.load %arg2[%c0_13, %c0_14] : memref<1408x128xbf16, #tpu.memory_space<vmem>>, vector<512x128xbf16>
    %cst_15 = arith.constant dense<0.000000e+00> : vector<2x128xf32>
    %28 = tpu.matmul %26, %27, %cst_15 {dimension_numbers = #tpu.dot_dimension_numbers<[1], [0], [0], [1], [0, 0, 1, 1], [], []>} : vector<2x512xbf16>, vector<512x128xbf16>, vector<2x128xf32> -> vector<2x128xf32>
    %29 = vector.extract_strided_slice %25 {offsets = [0, 512], sizes = [2, 512], strides = [1, 1]} : vector<2x1024xbf16> to vector<2x512xbf16>
    %c512 = arith.constant 512 : index
    %c0_16 = arith.constant 0 : index
    %30 = vector.load %arg2[%c512, %c0_16] : memref<1408x128xbf16, #tpu.memory_space<vmem>>, vector<512x128xbf16>
    %cst_17 = arith.constant dense<0.000000e+00> : vector<2x128xf32>
    %31 = tpu.matmul %29, %30, %cst_17 {dimension_numbers = #tpu.dot_dimension_numbers<[1], [0], [0], [1], [0, 0, 1, 1], [], []>} : vector<2x512xbf16>, vector<512x128xbf16>, vector<2x128xf32> -> vector<2x128xf32>
    %32 = tpu.concatenate %28, %31 in 1 : vector<2x128xf32>, vector<2x128xf32> -> vector<2x256xf32>
    %c2 = arith.constant 2 : index
    %c0_18 = arith.constant 0 : index
    %33 = vector.load %arg3[%c2, %c0_18] : memref<8x1024xf32, #tpu.memory_space<vmem>>, vector<1x256xf32>
    %c2_19 = arith.constant 2 : index
    %c256 = arith.constant 256 : index
    %34 = vector.load %arg3[%c2_19, %c256] : memref<8x1024xf32, #tpu.memory_space<vmem>>, vector<1x256xf32>
    %35 = vector.broadcast %33 : vector<1x256xf32> to vector<2x256xf32>
    %36 = arith.mulf %32, %35 : vector<2x256xf32>
    %37 = vector.broadcast %34 : vector<1x256xf32> to vector<2x256xf32>
    %38 = arith.addf %36, %37 : vector<2x256xf32>
    %cst_20 = arith.constant 0.000000e+00 : f32
    %39 = vector.broadcast %cst_20 : f32 to vector<2x256xf32>
    %40 = arith.maximumf %38, %39 : vector<2x256xf32>
    %c2_21 = arith.constant 2 : index
    %c512_22 = arith.constant 512 : index
    %41 = vector.load %arg3[%c2_21, %c512_22] : memref<8x1024xf32, #tpu.memory_space<vmem>>, vector<1x128xf32>
    %42 = arith.truncf %40 : vector<2x256xf32> to vector<2x256xbf16>
    %c1024 = arith.constant 1024 : index
    %c0_23 = arith.constant 0 : index
    %43 = vector.load %arg2[%c1024, %c0_23] : memref<1408x128xbf16, #tpu.memory_space<vmem>>, vector<256x128xbf16>
    %cst_24 = arith.constant dense<0.000000e+00> : vector<2x128xf32>
    %44 = tpu.matmul %42, %43, %cst_24 {dimension_numbers = #tpu.dot_dimension_numbers<[1], [0], [0], [1], [0, 0, 1, 1], [], []>} : vector<2x256xbf16>, vector<256x128xbf16>, vector<2x128xf32> -> vector<2x128xf32>
    %45 = vector.broadcast %41 : vector<1x128xf32> to vector<2x128xf32>
    %46 = arith.addf %44, %45 : vector<2x128xf32>
    %c2_25 = arith.constant 2 : index
    %c640 = arith.constant 640 : index
    %47 = vector.load %arg3[%c2_25, %c640] : memref<8x1024xf32, #tpu.memory_space<vmem>>, vector<1x128xf32>
    %48 = arith.truncf %46 : vector<2x128xf32> to vector<2x128xbf16>
    %c1280 = arith.constant 1280 : index
    %c0_26 = arith.constant 0 : index
    %49 = vector.load %arg2[%c1280, %c0_26] : memref<1408x128xbf16, #tpu.memory_space<vmem>>, vector<128x128xbf16>
    %cst_27 = arith.constant dense<0.000000e+00> : vector<2x128xf32>
    %50 = tpu.matmul %48, %49, %cst_27 {dimension_numbers = #tpu.dot_dimension_numbers<[1], [0], [0], [1], [0, 0, 1, 1], [], []>} : vector<2x128xbf16>, vector<128x128xbf16>, vector<2x128xf32> -> vector<2x128xf32>
    %51 = vector.broadcast %47 : vector<1x128xf32> to vector<2x128xf32>
    %52 = arith.addf %50, %51 : vector<2x128xf32>
    %53 = vector.extract_strided_slice %52 {offsets = [0, 0], sizes = [2, 8], strides = [1, 1]} : vector<2x128xf32> to vector<2x8xf32>
    %c0_28 = arith.constant 0 : index
    %c0_29 = arith.constant 0 : index
    %54 = vector.load %arg4[%c0_28, %c0_29] : memref<2x8xf32, #tpu.memory_space<vmem>>, vector<2x8xf32>
    tpu.vector_store %arg4[%c0_28, %c0_29], %53 {strides = array<i32>} : memref<2x8xf32, #tpu.memory_space<vmem>>, vector<2x8xf32>,
    return
  }
}

</mosaic_0001>

<llo_original>
// kernel: tpu_custom_call.1
$region0: #{tpu_custom_call.1}
  #allocation0 [shape = 'u32[]', space=smem, size = 0x4, offset = 0x4, fixed_abs, tag = 'smem constant byte address 0x4 - core index']
  #allocation1 [shape = 'u32[72,128]{1,0:T(1,128)}', space=vmem, size = 0x9000, scoped, tag = 'internal scratch']
  %s0 = inlined_call_operand.hbm [shape: f32[2,96,128], index: 0, kind: input, shape index: {}]
  %s1 = inlined_call_operand.hbm [shape: bf16[256,1024], index: 1, kind: input, shape index: {}]
  %s2 = inlined_call_operand.hbm [shape: bf16[1408,128], index: 2, kind: input, shape index: {}]
  %s3 = inlined_call_operand.hbm [shape: f32[8,1024], index: 3, kind: input, shape index: {}]
  %s4 = inlined_call_operand.hbm [shape: f32[2,8], index: 4, kind: output, shape index: {}]
  %s5 = sld [smem:[#allocation0]]
  $region42: #{tpu_custom_call.1} parent=0
    _
  %s7 = ssub.s32 1, %s5
  %s8 = scalar_select 0, %s7, %s5
  $region1: #{tpu_custom_call.1} parent=0
    #allocation2 [shape = 'u8[98304]{0}', space=vmem, size = 0x18000, scoped, tag = 'input window, operand 0, single buffered']
    #allocation3 [shape = 's32[1]{0}', space=sflag, size = 0x4, scoped, tag = 'scoped memory for tpu_custom_call.1']
    #allocation4 [shape = 's32[1]{0}', space=sflag, size = 0x4, scoped, tag = 'scoped memory for tpu_custom_call.1']
    #allocation5 [shape = 'u8[524288]{0}', space=vmem, size = 0x80000, scoped, tag = 'input window, operand 1, single buffered']
    #allocation6 [shape = 's32[1]{0}', space=sflag, size = 0x4, scoped, tag = 'scoped memory for tpu_custom_call.1']
    #allocation7 [shape = 'u8[360448]{0}', space=vmem, size = 0x58000, scoped, tag = 'input window, operand 2, single buffered']
    #allocation8 [shape = 'u8[32768]{0}', space=vmem, size = 0x8000, scoped, tag = 'input window, operand 3, single buffered']
    #allocation9 [shape = 's32[1]{0}', space=sflag, size = 0x4, scoped, tag = 'scoped memory for tpu_custom_call.1']
    #allocation10 [shape = 'u8[1024]{0}', space=vmem, size = 0x400, scoped, tag = 'output window, operand 0, single buffered']
    %9 = vsyncpa [#allocation3], 0
    %10 = vsyncpa [#allocation6], 0
    %11 = vsyncpa [#allocation9], 0
    %12 = vsyncpa [#allocation4], 0
    // Predicated region
    $region2: #{tpu_custom_call.1} parent=1 // pred_check
      _
    $region3: #{tpu_custom_call.1} parent=1 // pred_check_branch
      %14 = sbr.rel (0) target = $region5
    $region4: #{tpu_custom_call.1} parent=1 // pred_region
      %16 = vsyncadd [#allocation3], 0
      %s17 = sshll.u32 %s0, 4
      %s18 = int_to_ptr.hbm [resolvable:$true] %s17
      %s19 = sshll.u32 [#allocation2], 4
      %s20 = int_to_ptr.vmem [resolvable:$true] %s19
      %25 = dma.hbm_to_vmem [thread:$0]  %s18, 3072, %s20, [#allocation3], 128, 128, 8
    $region5: #{tpu_custom_call.1} parent=1 // pred_fallthru
      _
    // Predicated region
    $region6: #{tpu_custom_call.1} parent=1 // pred_check
      _
    $region7: #{tpu_custom_call.1} parent=1 // pred_check_branch
      %27 = sbr.rel (0) target = $region9
    $region8: #{tpu_custom_call.1} parent=1 // pred_region
      %29 = vsyncadd [#allocation6], 0
      %s30 = sshll.u32 %s1, 4
      %s31 = int_to_ptr.hbm [resolvable:$true] %s30
      %s32 = sshll.u32 [#allocation5], 4
      %s33 = int_to_ptr.vmem [resolvable:$true] %s32
      %38 = dma.hbm_to_vmem [thread:$0]  %s31, 16384, %s33, [#allocation6], 512, 512, 32
    $region9: #{tpu_custom_call.1} parent=1 // pred_fallthru
      _
    // Predicated region
    $region10: #{tpu_custom_call.1} parent=1 // pred_check
      _
    $region11: #{tpu_custom_call.1} parent=1 // pred_check_branch
      %40 = sbr.rel (0) target = $region13
    $region12: #{tpu_custom_call.1} parent=1 // pred_region
      %42 = vsyncadd [#allocation6], 0
      %s43 = sshll.u32 %s2, 4
      %s44 = int_to_ptr.hbm [resolvable:$true] %s43
      %s45 = sshll.u32 [#allocation7], 4
      %s46 = int_to_ptr.vmem [resolvable:$true] %s45
      %51 = dma.hbm_to_vmem [thread:$0]  %s44, 11264, %s46, [#allocation6], 64, 64, 4
    $region13: #{tpu_custom_call.1} parent=1 // pred_fallthru
      _
    // Predicated region
    $region14: #{tpu_custom_call.1} parent=1 // pred_check
      _
    $region15: #{tpu_custom_call.1} parent=1 // pred_check_branch
      %53 = sbr.rel (0) target = $region17
    $region16: #{tpu_custom_call.1} parent=1 // pred_region
      %55 = vsyncadd [#allocation9], 0
      %s57 = sshll.u32 %s3, 4
      %s58 = int_to_ptr.hbm [resolvable:$true] %s57
      %s59 = sshll.u32 [#allocation8], 4
      %s60 = int_to_ptr.vmem [resolvable:$true] %s59
      %62 = dma.hbm_to_vmem [thread:$0]  %s58, 1024, %s60, [#allocation9]
    $region17: #{tpu_custom_call.1} parent=1 // pred_fallthru
      _
    // Predicated region
    $region18: #{tpu_custom_call.1} parent=1 // pred_check
      _
    $region19: #{tpu_custom_call.1} parent=1 // pred_check_branch
      %64 = sbr.rel (0) target = $region21
    $region20: #{tpu_custom_call.1} parent=1 // pred_region
      %66 = dma.done [#allocation3], 3072
    $region21: #{tpu_custom_call.1} parent=1 // pred_fallthru
      _
    // Predicated region
    $region22: #{tpu_custom_call.1} parent=1 // pred_check
      _
    $region23: #{tpu_custom_call.1} parent=1 // pred_check_branch
      %68 = sbr.rel (0) target = $region25
    $region24: #{tpu_custom_call.1} parent=1 // pred_region
      %70 = dma.done [#allocation6], 16384
    $region25: #{tpu_custom_call.1} parent=1 // pred_fallthru
      _
    // Predicated region
    $region26: #{tpu_custom_call.1} parent=1 // pred_check
      _
    $region27: #{tpu_custom_call.1} parent=1 // pred_check_branch
      %72 = sbr.rel (0) target = $region29
    $region28: #{tpu_custom_call.1} parent=1 // pred_region
      %74 = dma.done [#allocation6], 11264
    $region29: #{tpu_custom_call.1} parent=1 // pred_fallthru
      _
    // Predicated region
    $region30: #{tpu_custom_call.1} parent=1 // pred_check
      _
    $region31: #{tpu_custom_call.1} parent=1 // pred_check_branch
      %76 = sbr.rel (0) target = $region33
    $region32: #{tpu_custom_call.1} parent=1 // pred_region
      %78 = dma.done [#allocation9], 1024
    $region33: #{tpu_custom_call.1} parent=1 // pred_fallthru
      _
    %v79 = vld [vmem:[#allocation2] sm:$0xff]
    %v80 = vld [vmem:[#allocation2 + $0x8] sm:$0xff]
    %v81 = vld [vmem:[#allocation2 + $0x10] sm:$0xff]
    %v82 = vld [vmem:[#allocation2 + $0x18] sm:$0xff]
    %v83 = vld [vmem:[#allocation2 + $0x20] sm:$0xff]
    %v84 = vld [vmem:[#allocation2 + $0x28] sm:$0xff]
    %v85 = vld [vmem:[#allocation2 + $0x30] sm:$0xff]
    %v86 = vld [vmem:[#allocation2 + $0x38] sm:$0xff]
    %v87 = vld [vmem:[#allocation2 + $0x40] sm:$0xff]
    %v88 = vld [vmem:[#allocation2 + $0x48] sm:$0xff]
    %v89 = vld [vmem:[#allocation2 + $0x50] sm:$0xff]
    %v90 = vld [vmem:[#allocation2 + $0x58] sm:$0xff]
    %v91 = vld [vmem:[#allocation2 + $0x60] sm:$0xff]
    %v92 = vld [vmem:[#allocation2 + $0x68] sm:$0xff]
    %v93 = vld [vmem:[#allocation2 + $0x70] sm:$0xff]
    %v94 = vld [vmem:[#allocation2 + $0x78] sm:$0xff]
    %v95 = vld [vmem:[#allocation2 + $0x80] sm:$0xff]
    %v96 = vld [vmem:[#allocation2 + $0x88] sm:$0xff]
    %v97 = vld [vmem:[#allocation2 + $0x90] sm:$0xff]
    %v98 = vld [vmem:[#allocation2 + $0x98] sm:$0xff]
    %v99 = vld [vmem:[#allocation2 + $0xa0] sm:$0xff]
    %v100 = vld [vmem:[#allocation2 + $0xa8] sm:$0xff]
    %v101 = vld [vmem:[#allocation2 + $0xb0] sm:$0xff]
    %v102 = vld [vmem:[#allocation2 + $0xb8] sm:$0xff]
    %v103 = vadd.f32 %v79, %v80
    %v104 = vadd.f32 %v103, %v81
    %v105 = vrot.slane %v104, 4
    %v106 = vadd.f32 %v104, %v105
    %v107 = vrot.slane %v106, 2
    %v108 = vadd.f32 %v106, %v107
    %v109 = vrot.slane %v108, 1
    %v110 = vadd.f32 %v108, %v109
    %v111 = vadd.f32 %v91, %v92
    %v112 = vadd.f32 %v111, %v93
    %v113 = vrot.slane %v112, 4
    %v114 = vadd.f32 %v112, %v113
    %v115 = vrot.slane %v114, 2
    %v116 = vadd.f32 %v114, %v115
    %v117 = vrot.slane %v116, 1
    %v118 = vadd.f32 %v116, %v117
    %v119 = vadd.f32 %v82, %v83
    %v120 = vadd.f32 %v119, %v84
    %v121 = vadd.f32 %v120, %v85
    %v122 = vadd.f32 %v121, %v86
    %v123 = vadd.f32 %v122, %v87
    %v124 = vrot.slane %v123, 4
    %v125 = vadd.f32 %v123, %v124
    %v126 = vrot.slane %v125, 2
    %v127 = vadd.f32 %v125, %v126
    %v128 = vrot.slane %v127, 1
    %v129 = vadd.f32 %v127, %v128
    %v130 = vadd.f32 %v94, %v95
    %v131 = vadd.f32 %v130, %v96
    %v132 = vadd.f32 %v131, %v97
    %v133 = vadd.f32 %v132, %v98
    %v134 = vadd.f32 %v133, %v99
    %v135 = vrot.slane %v134, 4
    %v136 = vadd.f32 %v134, %v135
    %v137 = vrot.slane %v136, 2
    %v138 = vadd.f32 %v136, %v137
    %v139 = vrot.slane %v138, 1
    %v140 = vadd.f32 %v138, %v139
    %v141 = vadd.f32 %v88, %v89
    %v142 = vadd.f32 %v141, %v90
    %v143 = vrot.slane %v142, 4
    %v144 = vadd.f32 %v142, %v143
    %v145 = vrot.slane %v144, 2
    %v146 = vadd.f32 %v144, %v145
    %v147 = vrot.slane %v146, 1
    %v148 = vadd.f32 %v146, %v147
    %v149 = vadd.f32 %v100, %v101
    %v150 = vadd.f32 %v149, %v102
    %v151 = vrot.slane %v150, 4
    %v152 = vadd.f32 %v150, %v151
    %v153 = vrot.slane %v152, 2
    %v154 = vadd.f32 %v152, %v153
    %v155 = vrot.slane %v154, 1
    %v156 = vadd.f32 %v154, %v155
    %v157 = vadd.f32 %v110, %v129
    %v158 = vadd.f32 %v118, %v140
    %v159 = vmul.f32 %v157, 0.013888889
    %v160 = vmul.f32 %v158, 0.013888889
    %v161 = vadd.f32 %v129, %v148
    %v162 = vadd.f32 %v140, %v156
    %v163 = vmul.f32 %v161, 0.013888889
    %v164 = vmul.f32 %v162, 0.013888889
    %vm167 = vcmask 1041409
    %v168 = vsel %vm167, %v160, %v159
    %v172 = vsel %vm167, %v164, %v163
    %v174 = vpack.c.bf16 %v168, %v168
    %v175 = vpack.c.bf16 %v172, %v172
    %v176 = vld [vmem:[#allocation5] sm:$0xff]
    %v177 = vld [vmem:[#allocation5 + $0x8] sm:$0xff]
    %v178 = vld [vmem:[#allocation5 + $0x10] sm:$0xff]
    %v179 = vld [vmem:[#allocation5 + $0x18] sm:$0xff]
    %v180 = vld [vmem:[#allocation5 + $0x20] sm:$0xff]
    %v181 = vld [vmem:[#allocation5 + $0x28] sm:$0xff]
    %v182 = vld [vmem:[#allocation5 + $0x30] sm:$0xff]
    %v183 = vld [vmem:[#allocation5 + $0x38] sm:$0xff]
    %v184 = vld [vmem:[#allocation5 + $0x40] sm:$0xff]
    %v185 = vld [vmem:[#allocation5 + $0x48] sm:$0xff]
    %v186 = vld [vmem:[#allocation5 + $0x50] sm:$0xff]
    %v187 = vld [vmem:[#allocation5 + $0x58] sm:$0xff]
    %v188 = vld [vmem:[#allocation5 + $0x60] sm:$0xff]
    %v189 = vld [vmem:[#allocation5 + $0x68] sm:$0xff]
    %v190 = vld [vmem:[#allocation5 + $0x70] sm:$0xff]
    %v191 = vld [vmem:[#allocation5 + $0x78] sm:$0xff]
    %v192 = vld [vmem:[#allocation5 + $0x80] sm:$0xff]
    %v193 = vld [vmem:[#allocation5 + $0x88] sm:$0xff]
    %v194 = vld [vmem:[#allocation5 + $0x90] sm:$0xff]
    %v195 = vld [vmem:[#allocation5 + $0x98] sm:$0xff]
    %v196 = vld [vmem:[#allocation5 + $0xa0] sm:$0xff]
    %v197 = vld [vmem:[#allocation5 + $0xa8] sm:$0xff]
    %v198 = vld [vmem:[#allocation5 + $0xb0] sm:$0xff]
    %v199 = vld [vmem:[#allocation5 + $0xb8] sm:$0xff]
    %v200 = vld [vmem:[#allocation5 + $0xc0] sm:$0xff]
    %v201 = vld [vmem:[#allocation5 + $0xc8] sm:$0xff]
    %v202 = vld [vmem:[#allocation5 + $0xd0] sm:$0xff]
    %v203 = vld [vmem:[#allocation5 + $0xd8] sm:$0xff]
    %v204 = vld [vmem:[#allocation5 + $0xe0] sm:$0xff]
    %v205 = vld [vmem:[#allocation5 + $0xe8] sm:$0xff]
    %v206 = vld [vmem:[#allocation5 + $0xf0] sm:$0xff]
    %v207 = vld [vmem:[#allocation5 + $0xf8] sm:$0xff]
    %v208 = vld [vmem:[#allocation5 + $0x100] sm:$0xff]
    %v209 = vld [vmem:[#allocation5 + $0x108] sm:$0xff]
    %v210 = vld [vmem:[#allocation5 + $0x110] sm:$0xff]
    %v211 = vld [vmem:[#allocation5 + $0x118] sm:$0xff]
    %v212 = vld [vmem:[#allocation5 + $0x120] sm:$0xff]
    %v213 = vld [vmem:[#allocation5 + $0x128] sm:$0xff]
    %v214 = vld [vmem:[#allocation5 + $0x130] sm:$0xff]
    %v215 = vld [vmem:[#allocation5 + $0x138] sm:$0xff]
    %v216 = vld [vmem:[#allocation5 + $0x140] sm:$0xff]
    %v217 = vld [vmem:[#allocation5 + $0x148] sm:$0xff]
    %v218 = vld [vmem:[#allocation5 + $0x150] sm:$0xff]
    %v219 = vld [vmem:[#allocation5 + $0x158] sm:$0xff]
    %v220 = vld [vmem:[#allocation5 + $0x160] sm:$0xff]
    %v221 = vld [vmem:[#allocation5 + $0x168] sm:$0xff]
    %v222 = vld [vmem:[#allocation5 + $0x170] sm:$0xff]
    %v223 = vld [vmem:[#allocation5 + $0x178] sm:$0xff]
    %v224 = vld [vmem:[#allocation5 + $0x180] sm:$0xff]
    %v225 = vld [vmem:[#allocation5 + $0x188] sm:$0xff]
    %v226 = vld [vmem:[#allocation5 + $0x190] sm:$0xff]
    %v227 = vld [vmem:[#allocation5 + $0x198] sm:$0xff]
    %v228 = vld [vmem:[#allocation5 + $0x1a0] sm:$0xff]
    %v229 = vld [vmem:[#allocation5 + $0x1a8] sm:$0xff]
    %v230 = vld [vmem:[#allocation5 + $0x1b0] sm:$0xff]
    %v231 = vld [vmem:[#allocation5 + $0x1b8] sm:$0xff]
    %v232 = vld [vmem:[#allocation5 + $0x1c0] sm:$0xff]
    %v233 = vld [vmem:[#allocation5 + $0x1c8] sm:$0xff]
    %v234 = vld [vmem:[#allocation5 + $0x1d0] sm:$0xff]
    %v235 = vld [vmem:[#allocation5 + $0x1d8] sm:$0xff]
    %v236 = vld [vmem:[#allocation5 + $0x1e0] sm:$0xff]
    %v237 = vld [vmem:[#allocation5 + $0x1e8] sm:$0xff]
    %v238 = vld [vmem:[#allocation5 + $0x1f0] sm:$0xff]
    %v239 = vld [vmem:[#allocation5 + $0x1f8] sm:$0xff]
    %v240 = vld [vmem:[#allocation5 + $0x200] sm:$0xff]
    %v241 = vld [vmem:[#allocation5 + $0x208] sm:$0xff]
    %v242 = vld [vmem:[#allocation5 + $0x210] sm:$0xff]
    %v243 = vld [vmem:[#allocation5 + $0x218] sm:$0xff]
    %v244 = vld [vmem:[#allocation5 + $0x220] sm:$0xff]
    %v245 = vld [vmem:[#allocation5 + $0x228] sm:$0xff]
    %v246 = vld [vmem:[#allocation5 + $0x230] sm:$0xff]
    %v247 = vld [vmem:[#allocation5 + $0x238] sm:$0xff]
    %v248 = vld [vmem:[#allocation5 + $0x240] sm:$0xff]
    %v249 = vld [vmem:[#allocation5 + $0x248] sm:$0xff]
    %v250 = vld [vmem:[#allocation5 + $0x250] sm:$0xff]
    %v251 = vld [vmem:[#allocation5 + $0x258] sm:$0xff]
    %v252 = vld [vmem:[#allocation5 + $0x260] sm:$0xff]
    %v253 = vld [vmem:[#allocation5 + $0x268] sm:$0xff]
    %v254 = vld [vmem:[#allocation5 + $0x270] sm:$0xff]
    %v255 = vld [vmem:[#allocation5 + $0x278] sm:$0xff]
    %v256 = vld [vmem:[#allocation5 + $0x280] sm:$0xff]
    %v257 = vld [vmem:[#allocation5 + $0x288] sm:$0xff]
    %v258 = vld [vmem:[#allocation5 + $0x290] sm:$0xff]
    %v259 = vld [vmem:[#allocation5 + $0x298] sm:$0xff]
    %v260 = vld [vmem:[#allocation5 + $0x2a0] sm:$0xff]
    %v261 = vld [vmem:[#allocation5 + $0x2a8] sm:$0xff]
    %v262 = vld [vmem:[#allocation5 + $0x2b0] sm:$0xff]
    %v263 = vld [vmem:[#allocation5 + $0x2b8] sm:$0xff]
    %v264 = vld [vmem:[#allocation5 + $0x2c0] sm:$0xff]
    %v265 = vld [vmem:[#allocation5 + $0x2c8] sm:$0xff]
    %v266 = vld [vmem:[#allocation5 + $0x2d0] sm:$0xff]
    %v267 = vld [vmem:[#allocation5 + $0x2d8] sm:$0xff]
    %v268 = vld [vmem:[#allocation5 + $0x2e0] sm:$0xff]
    %v269 = vld [vmem:[#allocation5 + $0x2e8] sm:$0xff]
    %v270 = vld [vmem:[#allocation5 + $0x2f0] sm:$0xff]
    %v271 = vld [vmem:[#allocation5 + $0x2f8] sm:$0xff]
    %v272 = vld [vmem:[#allocation5 + $0x300] sm:$0xff]
    %v273 = vld [vmem:[#allocation5 + $0x308] sm:$0xff]
    %v274 = vld [vmem:[#allocation5 + $0x310] sm:$0xff]
    %v275 = vld [vmem:[#allocation5 + $0x318] sm:$0xff]
    %v276 = vld [vmem:[#allocation5 + $0x320] sm:$0xff]
    %v277 = vld [vmem:[#allocation5 + $0x328] sm:$0xff]
    %v278 = vld [vmem:[#allocation5 + $0x330] sm:$0xff]
    %v279 = vld [vmem:[#allocation5 + $0x338] sm:$0xff]
    %v280 = vld [vmem:[#allocation5 + $0x340] sm:$0xff]
    %v281 = vld [vmem:[#allocation5 + $0x348] sm:$0xff]
    %v282 = vld [vmem:[#allocation5 + $0x350] sm:$0xff]
    %v283 = vld [vmem:[#allocation5 + $0x358] sm:$0xff]
    %v284 = vld [vmem:[#allocation5 + $0x360] sm:$0xff]
    %v285 = vld [vmem:[#allocation5 + $0x368] sm:$0xff]
    %v286 = vld [vmem:[#allocation5 + $0x370] sm:$0xff]
    %v287 = vld [vmem:[#allocation5 + $0x378] sm:$0xff]
    %v288 = vld [vmem:[#allocation5 + $0x380] sm:$0xff]
    %v289 = vld [vmem:[#allocation5 + $0x388] sm:$0xff]
    %v290 = vld [vmem:[#allocation5 + $0x390] sm:$0xff]
    %v291 = vld [vmem:[#allocation5 + $0x398] sm:$0xff]
    %v292 = vld [vmem:[#allocation5 + $0x3a0] sm:$0xff]
    %v293 = vld [vmem:[#allocation5 + $0x3a8] sm:$0xff]
    %v294 = vld [vmem:[#allocation5 + $0x3b0] sm:$0xff]
    %v295 = vld [vmem:[#allocation5 + $0x3b8] sm:$0xff]
    %v296 = vld [vmem:[#allocation5 + $0x3c0] sm:$0xff]
    %v297 = vld [vmem:[#allocation5 + $0x3c8] sm:$0xff]
    %v298 = vld [vmem:[#allocation5 + $0x3d0] sm:$0xff]
    %v299 = vld [vmem:[#allocation5 + $0x3d8] sm:$0xff]
    %v300 = vld [vmem:[#allocation5 + $0x3e0] sm:$0xff]
    %v301 = vld [vmem:[#allocation5 + $0x3e8] sm:$0xff]
    %v302 = vld [vmem:[#allocation5 + $0x3f0] sm:$0xff]
    %v303 = vld [vmem:[#allocation5 + $0x3f8] sm:$0xff]
    %v432 = vunpack.c.l.b16 %v176
    %v433 = vunpack.c.h.b16 %v176
    %v434 = vunpack.c.l.b16 %v177
    %v435 = vunpack.c.h.b16 %v177
    %v436 = vunpack.c.l.b16 %v178
    %v437 = vunpack.c.h.b16 %v178
    %v438 = vunpack.c.l.b16 %v179
    %v439 = vunpack.c.h.b16 %v179
    %v440 = vunpack.c.l.b16 %v180
    %v441 = vunpack.c.h.b16 %v180
    %v442 = vunpack.c.l.b16 %v181
    %v443 = vunpack.c.h.b16 %v181
    %v444 = vunpack.c.l.b16 %v182
    %v445 = vunpack.c.h.b16 %v182
    %v446 = vunpack.c.l.b16 %v183
    %v447 = vunpack.c.h.b16 %v183
    %v448 = vunpack.c.l.b16 %v184
    %v449 = vunpack.c.h.b16 %v184
    %v450 = vunpack.c.l.b16 %v185
    %v451 = vunpack.c.h.b16 %v185
    %v452 = vunpack.c.l.b16 %v186
    %v453 = vunpack.c.h.b16 %v186
    %v454 = vunpack.c.l.b16 %v187
    %v455 = vunpack.c.h.b16 %v187
    %v456 = vunpack.c.l.b16 %v188
    %v457 = vunpack.c.h.b16 %v188
    %v458 = vunpack.c.l.b16 %v189
    %v459 = vunpack.c.h.b16 %v189
    %v460 = vunpack.c.l.b16 %v190
    %v461 = vunpack.c.h.b16 %v190
    %v462 = vunpack.c.l.b16 %v191
    %v463 = vunpack.c.h.b16 %v191
    %v464 = vunpack.c.l.b16 %v192
    %v465 = vunpack.c.h.b16 %v192
    %v466 = vunpack.c.l.b16 %v193
    %v467 = vunpack.c.h.b16 %v193
    %v468 = vunpack.c.l.b16 %v194
    %v469 = vunpack.c.h.b16 %v194
    %v470 = vunpack.c.l.b16 %v195
    %v471 = vunpack.c.h.b16 %v195
    %v472 = vunpack.c.l.b16 %v196
    %v473 = vunpack.c.h.b16 %v196
    %v474 = vunpack.c.l.b16 %v197
    %v475 = vunpack.c.h.b16 %v197
    %v476 = vunpack.c.l.b16 %v198
    %v477 = vunpack.c.h.b16 %v198
    %v478 = vunpack.c.l.b16 %v199
    %v479 = vunpack.c.h.b16 %v199
    %v480 = vunpack.c.l.b16 %v200
    %v481 = vunpack.c.h.b16 %v200
    %v482 = vunpack.c.l.b16 %v201
    %v483 = vunpack.c.h.b16 %v201
    %v484 = vunpack.c.l.b16 %v202
    %v485 = vunpack.c.h.b16 %v202
    %v486 = vunpack.c.l.b16 %v203
    %v487 = vunpack.c.h.b16 %v203
    %v488 = vunpack.c.l.b16 %v204
    %v489 = vunpack.c.h.b16 %v204
    %v490 = vunpack.c.l.b16 %v205
    %v491 = vunpack.c.h.b16 %v205
    %v492 = vunpack.c.l.b16 %v206
    %v493 = vunpack.c.h.b16 %v206
    %v494 = vunpack.c.l.b16 %v207
    %v495 = vunpack.c.h.b16 %v207
    %v496 = vunpack.c.l.b16 %v208
    %v497 = vunpack.c.h.b16 %v208
    %v498 = vunpack.c.l.b16 %v209
    %v499 = vunpack.c.h.b16 %v209
    %v500 = vunpack.c.l.b16 %v210
    %v501 = vunpack.c.h.b16 %v210
    %v502 = vunpack.c.l.b16 %v211
    %v503 = vunpack.c.h.b16 %v211
    %v504 = vunpack.c.l.b16 %v212
    %v505 = vunpack.c.h.b16 %v212
    %v506 = vunpack.c.l.b16 %v213
    %v507 = vunpack.c.h.b16 %v213
    %v508 = vunpack.c.l.b16 %v214
    %v509 = vunpack.c.h.b16 %v214
    %v510 = vunpack.c.l.b16 %v215
    %v511 = vunpack.c.h.b16 %v215
    %v512 = vunpack.c.l.b16 %v216
    %v513 = vunpack.c.h.b16 %v216
    %v514 = vunpack.c.l.b16 %v217
    %v515 = vunpack.c.h.b16 %v217
    %v516 = vunpack.c.l.b16 %v218
    %v517 = vunpack.c.h.b16 %v218
    %v518 = vunpack.c.l.b16 %v219
    %v519 = vunpack.c.h.b16 %v219
    %v520 = vunpack.c.l.b16 %v220
    %v521 = vunpack.c.h.b16 %v220
    %v522 = vunpack.c.l.b16 %v221
    %v523 = vunpack.c.h.b16 %v221
    %v524 = vunpack.c.l.b16 %v222
    %v525 = vunpack.c.h.b16 %v222
    %v526 = vunpack.c.l.b16 %v223
    %v527 = vunpack.c.h.b16 %v223
    %v528 = vunpack.c.l.b16 %v224
    %v529 = vunpack.c.h.b16 %v224
    %v530 = vunpack.c.l.b16 %v225
    %v531 = vunpack.c.h.b16 %v225
    %v532 = vunpack.c.l.b16 %v226
    %v533 = vunpack.c.h.b16 %v226
    %v534 = vunpack.c.l.b16 %v227
    %v535 = vunpack.c.h.b16 %v227
    %v536 = vunpack.c.l.b16 %v228
    %v537 = vunpack.c.h.b16 %v228
    %v538 = vunpack.c.l.b16 %v229
    %v539 = vunpack.c.h.b16 %v229
    %v540 = vunpack.c.l.b16 %v230
    %v541 = vunpack.c.h.b16 %v230
    %v542 = vunpack.c.l.b16 %v231
    %v543 = vunpack.c.h.b16 %v231
    %v544 = vunpack.c.l.b16 %v232
    %v545 = vunpack.c.h.b16 %v232
    %v546 = vunpack.c.l.b16 %v233
    %v547 = vunpack.c.h.b16 %v233
    %v548 = vunpack.c.l.b16 %v234
    %v549 = vunpack.c.h.b16 %v234
    %v550 = vunpack.c.l.b16 %v235
    %v551 = vunpack.c.h.b16 %v235
    %v552 = vunpack.c.l.b16 %v236
    %v553 = vunpack.c.h.b16 %v236
    %v554 = vunpack.c.l.b16 %v237
    %v555 = vunpack.c.h.b16 %v237
    %v556 = vunpack.c.l.b16 %v238
    %v557 = vunpack.c.h.b16 %v238
    %v558 = vunpack.c.l.b16 %v239
    %v559 = vunpack.c.h.b16 %v239
    %v560 = vunpack.c.l.b16 %v240
    %v561 = vunpack.c.h.b16 %v240
    %v562 = vunpack.c.l.b16 %v241
    %v563 = vunpack.c.h.b16 %v241
    %v564 = vunpack.c.l.b16 %v242
    %v565 = vunpack.c.h.b16 %v242
    %v566 = vunpack.c.l.b16 %v243
    %v567 = vunpack.c.h.b16 %v243
    %v568 = vunpack.c.l.b16 %v244
    %v569 = vunpack.c.h.b16 %v244
    %v570 = vunpack.c.l.b16 %v245
    %v571 = vunpack.c.h.b16 %v245
    %v572 = vunpack.c.l.b16 %v246
    %v573 = vunpack.c.h.b16 %v246
    %v574 = vunpack.c.l.b16 %v247
    %v575 = vunpack.c.h.b16 %v247
    %v576 = vunpack.c.l.b16 %v248
    %v577 = vunpack.c.h.b16 %v248
    %v578 = vunpack.c.l.b16 %v249
    %v579 = vunpack.c.h.b16 %v249
    %v580 = vunpack.c.l.b16 %v250
    %v581 = vunpack.c.h.b16 %v250
    %v582 = vunpack.c.l.b16 %v251
    %v583 = vunpack.c.h.b16 %v251
    %v584 = vunpack.c.l.b16 %v252
    %v585 = vunpack.c.h.b16 %v252
    %v586 = vunpack.c.l.b16 %v253
    %v587 = vunpack.c.h.b16 %v253
    %v588 = vunpack.c.l.b16 %v254
    %v589 = vunpack.c.h.b16 %v254
    %v590 = vunpack.c.l.b16 %v255
    %v591 = vunpack.c.h.b16 %v255
    %v592 = vunpack.c.l.b16 %v256
    %v593 = vunpack.c.h.b16 %v256
    %v594 = vunpack.c.l.b16 %v257
    %v595 = vunpack.c.h.b16 %v257
    %v596 = vunpack.c.l.b16 %v258
    %v597 = vunpack.c.h.b16 %v258
    %v598 = vunpack.c.l.b16 %v259
    %v599 = vunpack.c.h.b16 %v259
    %v600 = vunpack.c.l.b16 %v260
    %v601 = vunpack.c.h.b16 %v260
    %v602 = vunpack.c.l.b16 %v261
    %v603 = vunpack.c.h.b16 %v261
    %v604 = vunpack.c.l.b16 %v262
    %v605 = vunpack.c.h.b16 %v262
    %v606 = vunpack.c.l.b16 %v263
    %v607 = vunpack.c.h.b16 %v263
    %v608 = vunpack.c.l.b16 %v264
    %v609 = vunpack.c.h.b16 %v264
    %v610 = vunpack.c.l.b16 %v265
    %v611 = vunpack.c.h.b16 %v265
    %v612 = vunpack.c.l.b16 %v266
    %v613 = vunpack.c.h.b16 %v266
    %v614 = vunpack.c.l.b16 %v267
    %v615 = vunpack.c.h.b16 %v267
    %v616 = vunpack.c.l.b16 %v268
    %v617 = vunpack.c.h.b16 %v268
    %v618 = vunpack.c.l.b16 %v269
    %v619 = vunpack.c.h.b16 %v269
    %v620 = vunpack.c.l.b16 %v270
    %v621 = vunpack.c.h.b16 %v270
    %v622 = vunpack.c.l.b16 %v271
    %v623 = vunpack.c.h.b16 %v271
    %v624 = vunpack.c.l.b16 %v272
    %v625 = vunpack.c.h.b16 %v272
    %v626 = vunpack.c.l.b16 %v273
    %v627 = vunpack.c.h.b16 %v273
    %v628 = vunpack.c.l.b16 %v274
    %v629 = vunpack.c.h.b16 %v274
    %v630 = vunpack.c.l.b16 %v275
    %v631 = vunpack.c.h.b16 %v275
    %v632 = vunpack.c.l.b16 %v276
    %v633 = vunpack.c.h.b16 %v276
    %v634 = vunpack.c.l.b16 %v277
    %v635 = vunpack.c.h.b16 %v277
    %v636 = vunpack.c.l.b16 %v278
    %v637 = vunpack.c.h.b16 %v278
    %v638 = vunpack.c.l.b16 %v279
    %v639 = vunpack.c.h.b16 %v279
    %v640 = vunpack.c.l.b16 %v280
    %v641 = vunpack.c.h.b16 %v280
    %v642 = vunpack.c.l.b16 %v281
    %v643 = vunpack.c.h.b16 %v281
    %v644 = vunpack.c.l.b16 %v282
    %v645 = vunpack.c.h.b16 %v282
    %v646 = vunpack.c.l.b16 %v283
    %v647 = vunpack.c.h.b16 %v283
    %v648 = vunpack.c.l.b16 %v284
    %v649 = vunpack.c.h.b16 %v284
    %v650 = vunpack.c.l.b16 %v285
    %v651 = vunpack.c.h.b16 %v285
    %v652 = vunpack.c.l.b16 %v286
    %v653 = vunpack.c.h.b16 %v286
    %v654 = vunpack.c.l.b16 %v287
    %v655 = vunpack.c.h.b16 %v287
    %v656 = vunpack.c.l.b16 %v288
    %v657 = vunpack.c.h.b16 %v288
    %v658 = vunpack.c.l.b16 %v289
    %v659 = vunpack.c.h.b16 %v289
    %v660 = vunpack.c.l.b16 %v290
    %v661 = vunpack.c.h.b16 %v290
    %v662 = vunpack.c.l.b16 %v291
    %v663 = vunpack.c.h.b16 %v291
    %v664 = vunpack.c.l.b16 %v292
    %v665 = vunpack.c.h.b16 %v292
    %v666 = vunpack.c.l.b16 %v293
    %v667 = vunpack.c.h.b16 %v293
    %v668 = vunpack.c.l.b16 %v294
    %v669 = vunpack.c.h.b16 %v294
    %v670 = vunpack.c.l.b16 %v295
    %v671 = vunpack.c.h.b16 %v295
    %v672 = vunpack.c.l.b16 %v296
    %v673 = vunpack.c.h.b16 %v296
    %v674 = vunpack.c.l.b16 %v297
    %v675 = vunpack.c.h.b16 %v297
    %v676 = vunpack.c.l.b16 %v298
    %v677 = vunpack.c.h.b16 %v298
    %v678 = vunpack.c.l.b16 %v299
    %v679 = vunpack.c.h.b16 %v299
    %v680 = vunpack.c.l.b16 %v300
    %v681 = vunpack.c.h.b16 %v300
    %v682 = vunpack.c.l.b16 %v301
    %v683 = vunpack.c.h.b16 %v301
    %v684 = vunpack.c.l.b16 %v302
    %v685 = vunpack.c.h.b16 %v302
    %v686 = vunpack.c.l.b16 %v303
    %v687 = vunpack.c.h.b16 %v303
    %v688 = vpack.c.b16 %v440, %v432
    %v689 = vpack.c.b16 %v441, %v433
    %v690 = vpack.c.b16 %v442, %v434
    %v691 = vpack.c.b16 %v443, %v435
    %v692 = vpack.c.b16 %v444, %v436
    %v693 = vpack.c.b16 %v445, %v437
    %v694 = vpack.c.b16 %v446, %v438
    %v695 = vpack.c.b16 %v447, %v439
    %v696 = vpack.c.b16 %v456, %v448
    %v697 = vpack.c.b16 %v457, %v449
    %v698 = vpack.c.b16 %v458, %v450
    %v699 = vpack.c.b16 %v459, %v451
    %v700 = vpack.c.b16 %v460, %v452
    %v701 = vpack.c.b16 %v461, %v453
    %v702 = vpack.c.b16 %v462, %v454
    %v703 = vpack.c.b16 %v463, %v455
    %v704 = vpack.c.b16 %v472, %v464
    %v705 = vpack.c.b16 %v473, %v465
    %v706 = vpack.c.b16 %v474, %v466
    %v707 = vpack.c.b16 %v475, %v467
    %v708 = vpack.c.b16 %v476, %v468
    %v709 = vpack.c.b16 %v477, %v469
    %v710 = vpack.c.b16 %v478, %v470
    %v711 = vpack.c.b16 %v479, %v471
    %v712 = vpack.c.b16 %v488, %v480
    %v713 = vpack.c.b16 %v489, %v481
    %v714 = vpack.c.b16 %v490, %v482
    %v715 = vpack.c.b16 %v491, %v483
    %v716 = vpack.c.b16 %v492, %v484
    %v717 = vpack.c.b16 %v493, %v485
    %v718 = vpack.c.b16 %v494, %v486
    %v719 = vpack.c.b16 %v495, %v487
    %v720 = vpack.c.b16 %v504, %v496
    %v721 = vpack.c.b16 %v505, %v497
    %v722 = vpack.c.b16 %v506, %v498
    %v723 = vpack.c.b16 %v507, %v499
    %v724 = vpack.c.b16 %v508, %v500
    %v725 = vpack.c.b16 %v509, %v501
    %v726 = vpack.c.b16 %v510, %v502
    %v727 = vpack.c.b16 %v511, %v503
    %v728 = vpack.c.b16 %v520, %v512
    %v729 = vpack.c.b16 %v521, %v513
    %v730 = vpack.c.b16 %v522, %v514
    %v731 = vpack.c.b16 %v523, %v515
    %v732 = vpack.c.b16 %v524, %v516
    %v733 = vpack.c.b16 %v525, %v517
    %v734 = vpack.c.b16 %v526, %v518
    %v735 = vpack.c.b16 %v527, %v519
    %v736 = vpack.c.b16 %v536, %v528
    %v737 = vpack.c.b16 %v537, %v529
    %v738 = vpack.c.b16 %v538, %v530
    %v739 = vpack.c.b16 %v539, %v531
    %v740 = vpack.c.b16 %v540, %v532
    %v741 = vpack.c.b16 %v541, %v533
    %v742 = vpack.c.b16 %v542, %v534
    %v743 = vpack.c.b16 %v543, %v535
    %v744 = vpack.c.b16 %v552, %v544
    %v745 = vpack.c.b16 %v553, %v545
    %v746 = vpack.c.b16 %v554, %v546
    %v747 = vpack.c.b16 %v555, %v547
    %v748 = vpack.c.b16 %v556, %v548
    %v749 = vpack.c.b16 %v557, %v549
    %v750 = vpack.c.b16 %v558, %v550
    %v751 = vpack.c.b16 %v559, %v551
    %v752 = vpack.c.b16 %v568, %v560
    %v753 = vpack.c.b16 %v569, %v561
    %v754 = vpack.c.b16 %v570, %v562
    %v755 = vpack.c.b16 %v571, %v563
    %v756 = vpack.c.b16 %v572, %v564
    %v757 = vpack.c.b16 %v573, %v565
    %v758 = vpack.c.b16 %v574, %v566
    %v759 = vpack.c.b16 %v575, %v567
    %v760 = vpack.c.b16 %v584, %v576
    %v761 = vpack.c.b16 %v585, %v577
    %v762 = vpack.c.b16 %v586, %v578
    %v763 = vpack.c.b16 %v587, %v579
    %v764 = vpack.c.b16 %v588, %v580
    %v765 = vpack.c.b16 %v589, %v581
    %v766 = vpack.c.b16 %v590, %v582
    %v767 = vpack.c.b16 %v591, %v583
    %v768 = vpack.c.b16 %v600, %v592
    %v769 = vpack.c.b16 %v601, %v593
    %v770 = vpack.c.b16 %v602, %v594
    %v771 = vpack.c.b16 %v603, %v595
    %v772 = vpack.c.b16 %v604, %v596
    %v773 = vpack.c.b16 %v605, %v597
    %v774 = vpack.c.b16 %v606, %v598
    %v775 = vpack.c.b16 %v607, %v599
    %v776 = vpack.c.b16 %v616, %v608
    %v777 = vpack.c.b16 %v617, %v609
    %v778 = vpack.c.b16 %v618, %v610
    %v779 = vpack.c.b16 %v619, %v611
    %v780 = vpack.c.b16 %v620, %v612
    %v781 = vpack.c.b16 %v621, %v613
    %v782 = vpack.c.b16 %v622, %v614
    %v783 = vpack.c.b16 %v623, %v615
    %v784 = vpack.c.b16 %v632, %v624
    %v785 = vpack.c.b16 %v633, %v625
    %v786 = vpack.c.b16 %v634, %v626
    %v787 = vpack.c.b16 %v635, %v627
    %v788 = vpack.c.b16 %v636, %v628
    %v789 = vpack.c.b16 %v637, %v629
    %v790 = vpack.c.b16 %v638, %v630
    %v791 = vpack.c.b16 %v639, %v631
    %v792 = vpack.c.b16 %v648, %v640
    %v793 = vpack.c.b16 %v649, %v641
    %v794 = vpack.c.b16 %v650, %v642
    %v795 = vpack.c.b16 %v651, %v643
    %v796 = vpack.c.b16 %v652, %v644
    %v797 = vpack.c.b16 %v653, %v645
    %v798 = vpack.c.b16 %v654, %v646
    %v799 = vpack.c.b16 %v655, %v647
    %v800 = vpack.c.b16 %v664, %v656
    %v801 = vpack.c.b16 %v665, %v657
    %v802 = vpack.c.b16 %v666, %v658
    %v803 = vpack.c.b16 %v667, %v659
    %v804 = vpack.c.b16 %v668, %v660
    %v805 = vpack.c.b16 %v669, %v661
    %v806 = vpack.c.b16 %v670, %v662
    %v807 = vpack.c.b16 %v671, %v663
    %v808 = vpack.c.b16 %v680, %v672
    %v809 = vpack.c.b16 %v681, %v673
    %v810 = vpack.c.b16 %v682, %v674
    %v811 = vpack.c.b16 %v683, %v675
    %v812 = vpack.c.b16 %v684, %v676
    %v813 = vpack.c.b16 %v685, %v677
    %v814 = vpack.c.b16 %v686, %v678
    %v815 = vpack.c.b16 %v687, %v679
    %944 = vmatpush.bf16.msra.mxu0 %v744
    %945 = vmatpush.bf16.msra.mxu0 %v736
    %946 = vmatpush.bf16.msra.mxu0 %v728
    %947 = vmatpush.bf16.msra.mxu0 %v720
    %948 = vmatpush.bf16.msra.mxu0 %v712
    %949 = vmatpush.bf16.msra.mxu0 %v704
    %950 = vmatpush.bf16.msra.mxu0 %v696
    %951 = vmatpush.bf16.msra.mxu0 %v688
    %952 = vmatmul.bf16.gmra.mxu0 %v174
    %v953 = vpop.f32.mrf.mxu0
    %v954 = vadd.f32 0.0, %v953
    %v955 = vpop.f32.mrf.mxu0
    %956 = vdwg.mxu0
    %957 = vmatpush.bf16.msra.mxu0 %v808
    %958 = vmatpush.bf16.msra.mxu0 %v800
    %959 = vmatpush.bf16.msra.mxu0 %v792
    %960 = vmatpush.bf16.msra.mxu0 %v784
    %961 = vmatpush.bf16.msra.mxu0 %v776
    %962 = vmatpush.bf16.msra.mxu0 %v768
    %963 = vmatpush.bf16.msra.mxu0 %v760
    %964 = vmatpush.bf16.msra.mxu0 %v752
    %965 = vmatmul.bf16.gmra.mxu0 %v175
    %v966 = vpop.f32.mrf.mxu0
    %v967 = vadd.f32 %v954, %v966
    %v968 = vpop.f32.mrf.mxu0
    %969 = vdwg.mxu0
    %970 = vmatpush.bf16.msra.mxu0 %v745
    %971 = vmatpush.bf16.msra.mxu0 %v737
    %972 = vmatpush.bf16.msra.mxu0 %v729
    %973 = vmatpush.bf16.msra.mxu0 %v721
    %974 = vmatpush.bf16.msra.mxu0 %v713
    %975 = vmatpush.bf16.msra.mxu0 %v705
    %976 = vmatpush.bf16.msra.mxu0 %v697
    %977 = vmatpush.bf16.msra.mxu0 %v689
    %978 = vmatmul.bf16.gmra.mxu0 %v174
    %v979 = vpop.f32.mrf.mxu0
    %v980 = vadd.f32 0.0, %v979
    %v981 = vpop.f32.mrf.mxu0
    %982 = vdwg.mxu0
    %983 = vmatpush.bf16.msra.mxu0 %v809
    %984 = vmatpush.bf16.msra.mxu0 %v801
    %985 = vmatpush.bf16.msra.mxu0 %v793
    %986 = vmatpush.bf16.msra.mxu0 %v785
    %987 = vmatpush.bf16.msra.mxu0 %v777
    %988 = vmatpush.bf16.msra.mxu0 %v769
    %989 = vmatpush.bf16.msra.mxu0 %v761
    %990 = vmatpush.bf16.msra.mxu0 %v753
    %991 = vmatmul.bf16.gmra.mxu0 %v175
    %v992 = vpop.f32.mrf.mxu0
    %v993 = vadd.f32 %v980, %v992
    %v994 = vpop.f32.mrf.mxu0
    %995 = vdwg.mxu0
    %996 = vmatpush.bf16.msra.mxu0 %v746
    %997 = vmatpush.bf16.msra.mxu0 %v738
    %998 = vmatpush.bf16.msra.mxu0 %v730
    %999 = vmatpush.bf16.msra.mxu0 %v722
    %1000 = vmatpush.bf16.msra.mxu0 %v714
    %1001 = vmatpush.bf16.msra.mxu0 %v706
    %1002 = vmatpush.bf16.msra.mxu0 %v698
    %1003 = vmatpush.bf16.msra.mxu0 %v690
    %1004 = vmatmul.bf16.gmra.mxu0 %v174
    %v1005 = vpop.f32.mrf.mxu0
    %v1006 = vadd.f32 0.0, %v1005
    %v1007 = vpop.f32.mrf.mxu0
    %1008 = vdwg.mxu0
    %1009 = vmatpush.bf16.msra.mxu0 %v810
    %1010 = vmatpush.bf16.msra.mxu0 %v802
    %1011 = vmatpush.bf16.msra.mxu0 %v794
    %1012 = vmatpush.bf16.msra.mxu0 %v786
    %1013 = vmatpush.bf16.msra.mxu0 %v778
    %1014 = vmatpush.bf16.msra.mxu0 %v770
    %1015 = vmatpush.bf16.msra.mxu0 %v762
    %1016 = vmatpush.bf16.msra.mxu0 %v754
    %1017 = vmatmul.bf16.gmra.mxu0 %v175
    %v1018 = vpop.f32.mrf.mxu0
    %v1019 = vadd.f32 %v1006, %v1018
    %v1020 = vpop.f32.mrf.mxu0
    %1021 = vdwg.mxu0
    %1022 = vmatpush.bf16.msra.mxu0 %v747
    %1023 = vmatpush.bf16.msra.mxu0 %v739
    %1024 = vmatpush.bf16.msra.mxu0 %v731
    %1025 = vmatpush.bf16.msra.mxu0 %v723
    %1026 = vmatpush.bf16.msra.mxu0 %v715
    %1027 = vmatpush.bf16.msra.mxu0 %v707
    %1028 = vmatpush.bf16.msra.mxu0 %v699
    %1029 = vmatpush.bf16.msra.mxu0 %v691
    %1030 = vmatmul.bf16.gmra.mxu0 %v174
    %v1031 = vpop.f32.mrf.mxu0
    %v1032 = vadd.f32 0.0, %v1031
    %v1033 = vpop.f32.mrf.mxu0
    %1034 = vdwg.mxu0
    %1035 = vmatpush.bf16.msra.mxu0 %v811
    %1036 = vmatpush.bf16.msra.mxu0 %v803
    %1037 = vmatpush.bf16.msra.mxu0 %v795
    %1038 = vmatpush.bf16.msra.mxu0 %v787
    %1039 = vmatpush.bf16.msra.mxu0 %v779
    %1040 = vmatpush.bf16.msra.mxu0 %v771
    %1041 = vmatpush.bf16.msra.mxu0 %v763
    %1042 = vmatpush.bf16.msra.mxu0 %v755
    %1043 = vmatmul.bf16.gmra.mxu0 %v175
    %v1044 = vpop.f32.mrf.mxu0
    %v1045 = vadd.f32 %v1032, %v1044
    %v1046 = vpop.f32.mrf.mxu0
    %1047 = vdwg.mxu0
    %1048 = vmatpush.bf16.msra.mxu0 %v748
    %1049 = vmatpush.bf16.msra.mxu0 %v740
    %1050 = vmatpush.bf16.msra.mxu0 %v732
    %1051 = vmatpush.bf16.msra.mxu0 %v724
    %1052 = vmatpush.bf16.msra.mxu0 %v716
    %1053 = vmatpush.bf16.msra.mxu0 %v708
    %1054 = vmatpush.bf16.msra.mxu0 %v700
    %1055 = vmatpush.bf16.msra.mxu0 %v692
    %1056 = vmatmul.bf16.gmra.mxu0 %v174
    %v1057 = vpop.f32.mrf.mxu0
    %v1058 = vadd.f32 0.0, %v1057
    %v1059 = vpop.f32.mrf.mxu0
    %1060 = vdwg.mxu0
    %1061 = vmatpush.bf16.msra.mxu0 %v812
    %1062 = vmatpush.bf16.msra.mxu0 %v804
    %1063 = vmatpush.bf16.msra.mxu0 %v796
    %1064 = vmatpush.bf16.msra.mxu0 %v788
    %1065 = vmatpush.bf16.msra.mxu0 %v780
    %1066 = vmatpush.bf16.msra.mxu0 %v772
    %1067 = vmatpush.bf16.msra.mxu0 %v764
    %1068 = vmatpush.bf16.msra.mxu0 %v756
    %1069 = vmatmul.bf16.gmra.mxu0 %v175
    %v1070 = vpop.f32.mrf.mxu0
    %v1071 = vadd.f32 %v1058, %v1070
    %v1072 = vpop.f32.mrf.mxu0
    %1073 = vdwg.mxu0
    %1074 = vmatpush.bf16.msra.mxu0 %v749
    %1075 = vmatpush.bf16.msra.mxu0 %v741
    %1076 = vmatpush.bf16.msra.mxu0 %v733
    %1077 = vmatpush.bf16.msra.mxu0 %v725
    %1078 = vmatpush.bf16.msra.mxu0 %v717
    %1079 = vmatpush.bf16.msra.mxu0 %v709
    %1080 = vmatpush.bf16.msra.mxu0 %v701
    %1081 = vmatpush.bf16.msra.mxu0 %v693
    %1082 = vmatmul.bf16.gmra.mxu0 %v174
    %v1083 = vpop.f32.mrf.mxu0
    %v1084 = vadd.f32 0.0, %v1083
    %v1085 = vpop.f32.mrf.mxu0
    %1086 = vdwg.mxu0
    %1087 = vmatpush.bf16.msra.mxu0 %v813
    %1088 = vmatpush.bf16.msra.mxu0 %v805
    %1089 = vmatpush.bf16.msra.mxu0 %v797
    %1090 = vmatpush.bf16.msra.mxu0 %v789
    %1091 = vmatpush.bf16.msra.mxu0 %v781
    %1092 = vmatpush.bf16.msra.mxu0 %v773
    %1093 = vmatpush.bf16.msra.mxu0 %v765
    %1094 = vmatpush.bf16.msra.mxu0 %v757
    %1095 = vmatmul.bf16.gmra.mxu0 %v175
    %v1096 = vpop.f32.mrf.mxu0
    %v1097 = vadd.f32 %v1084, %v1096
    %v1098 = vpop.f32.mrf.mxu0
    %1099 = vdwg.mxu0
    %1100 = vmatpush.bf16.msra.mxu0 %v750
    %1101 = vmatpush.bf16.msra.mxu0 %v742
    %1102 = vmatpush.bf16.msra.mxu0 %v734
    %1103 = vmatpush.bf16.msra.mxu0 %v726
    %1104 = vmatpush.bf16.msra.mxu0 %v718
    %1105 = vmatpush.bf16.msra.mxu0 %v710
    %1106 = vmatpush.bf16.msra.mxu0 %v702
    %1107 = vmatpush.bf16.msra.mxu0 %v694
    %1108 = vmatmul.bf16.gmra.mxu0 %v174
    %v1109 = vpop.f32.mrf.mxu0
    %v1110 = vadd.f32 0.0, %v1109
    %v1111 = vpop.f32.mrf.mxu0
    %1112 = vdwg.mxu0
    %1113 = vmatpush.bf16.msra.mxu0 %v814
    %1114 = vmatpush.bf16.msra.mxu0 %v806
    %1115 = vmatpush.bf16.msra.mxu0 %v798
    %1116 = vmatpush.bf16.msra.mxu0 %v790
    %1117 = vmatpush.bf16.msra.mxu0 %v782
    %1118 = vmatpush.bf16.msra.mxu0 %v774
    %1119 = vmatpush.bf16.msra.mxu0 %v766
    %1120 = vmatpush.bf16.msra.mxu0 %v758
    %1121 = vmatmul.bf16.gmra.mxu0 %v175
    %v1122 = vpop.f32.mrf.mxu0
    %v1123 = vadd.f32 %v1110, %v1122
    %v1124 = vpop.f32.mrf.mxu0
    %1125 = vdwg.mxu0
    %1126 = vmatpush.bf16.msra.mxu0 %v751
    %1127 = vmatpush.bf16.msra.mxu0 %v743
    %1128 = vmatpush.bf16.msra.mxu0 %v735
    %1129 = vmatpush.bf16.msra.mxu0 %v727
    %1130 = vmatpush.bf16.msra.mxu0 %v719
    %1131 = vmatpush.bf16.msra.mxu0 %v711
    %1132 = vmatpush.bf16.msra.mxu0 %v703
    %1133 = vmatpush.bf16.msra.mxu0 %v695
    %1134 = vmatmul.bf16.gmra.mxu0 %v174
    %v1135 = vpop.f32.mrf.mxu0
    %v1136 = vadd.f32 0.0, %v1135
    %v1137 = vpop.f32.mrf.mxu0
    %1138 = vdwg.mxu0
    %1139 = vmatpush.bf16.msra.mxu0 %v815
    %1140 = vmatpush.bf16.msra.mxu0 %v807
    %1141 = vmatpush.bf16.msra.mxu0 %v799
    %1142 = vmatpush.bf16.msra.mxu0 %v791
    %1143 = vmatpush.bf16.msra.mxu0 %v783
    %1144 = vmatpush.bf16.msra.mxu0 %v775
    %1145 = vmatpush.bf16.msra.mxu0 %v767
    %1146 = vmatpush.bf16.msra.mxu0 %v759
    %1147 = vmatmul.bf16.gmra.mxu0 %v175
    %v1148 = vpop.f32.mrf.mxu0
    %v1149 = vadd.f32 %v1136, %v1148
    %v1150 = vpop.f32.mrf.mxu0
    %1151 = vdwg.mxu0
    %v1152 = vld [vmem:[#allocation8] ss:$8 sm:$0xf]
    %v1153 = vld [vmem:[#allocation8] ss:$8 sm:$0xf0]
    %v1154 = vor.u32 %v1152, %v1153
    %s1155 = scalar_lea.vmem [#allocation8], 1
    %v1156 = vld [vmem:[%s1155] ss:$8 sm:$0xf]
    %v1157 = vld [vmem:[%s1155] ss:$8 sm:$0xf0]
    %v1158 = vor.u32 %v1156, %v1157
    %v1160 = vperm.slane %v1154, 0
    %v1161 = vperm.slane %v1154, 1
    %v1162 = vperm.slane %v1154, 2
    %v1163 = vperm.slane %v1154, 3
    %v1164 = vperm.slane %v1154, 4
    %v1165 = vperm.slane %v1154, 5
    %v1166 = vperm.slane %v1154, 6
    %v1167 = vperm.slane %v1154, 7
    %v1176 = vmul.f32 %v967, %v1160
    %v1177 = vmul.f32 %v993, %v1161
    %v1178 = vmul.f32 %v1019, %v1162
    %v1179 = vmul.f32 %v1045, %v1163
    %v1180 = vmul.f32 %v1071, %v1164
    %v1181 = vmul.f32 %v1097, %v1165
    %v1182 = vmul.f32 %v1123, %v1166
    %v1183 = vmul.f32 %v1149, %v1167
    %v1185 = vperm.slane %v1158, 0
    %v1186 = vperm.slane %v1158, 1
    %v1187 = vperm.slane %v1158, 2
    %v1188 = vperm.slane %v1158, 3
    %v1189 = vperm.slane %v1158, 4
    %v1190 = vperm.slane %v1158, 5
    %v1191 = vperm.slane %v1158, 6
    %v1192 = vperm.slane %v1158, 7
    %v1201 = vadd.f32 %v1176, %v1185
    %v1202 = vadd.f32 %v1177, %v1186
    %v1203 = vadd.f32 %v1178, %v1187
    %v1204 = vadd.f32 %v1179, %v1188
    %v1205 = vadd.f32 %v1180, %v1189
    %v1206 = vadd.f32 %v1181, %v1190
    %v1207 = vadd.f32 %v1182, %v1191
    %v1208 = vadd.f32 %v1183, %v1192
    %v1209 = vmax.f32 %v1201, 0.0
    %v1210 = vmax.f32 %v1202, 0.0
    %v1211 = vmax.f32 %v1203, 0.0
    %v1212 = vmax.f32 %v1204, 0.0
    %v1213 = vmax.f32 %v1205, 0.0
    %v1214 = vmax.f32 %v1206, 0.0
    %v1215 = vmax.f32 %v1207, 0.0
    %v1216 = vmax.f32 %v1208, 0.0
    %v1217 = vpack.c.bf16 %v1210, %v1209
    %v1218 = vpack.c.bf16 %v1212, %v1211
    %v1219 = vpack.c.bf16 %v1214, %v1213
    %v1220 = vpack.c.bf16 %v1216, %v1215
    %v1221 = vld [vmem:[#allocation7] sm:$0xf]
    %v1222 = vld [vmem:[#allocation7 + $0x4] sm:$0xf]
    %v1223 = vld [vmem:[#allocation7 + $0x8] sm:$0xf]
    %v1224 = vld [vmem:[#allocation7 + $0xc] sm:$0xf]
    %v1225 = vld [vmem:[#allocation7 + $0x10] sm:$0xf]
    %v1226 = vld [vmem:[#allocation7 + $0x14] sm:$0xf]
    %v1227 = vld [vmem:[#allocation7 + $0x18] sm:$0xf]
    %v1228 = vld [vmem:[#allocation7 + $0x1c] sm:$0xf]
    %v1229 = vld [vmem:[#allocation7 + $0x20] sm:$0xf]
    %v1230 = vld [vmem:[#allocation7 + $0x24] sm:$0xf]
    %v1231 = vld [vmem:[#allocation7 + $0x28] sm:$0xf]
    %v1232 = vld [vmem:[#allocation7 + $0x2c] sm:$0xf]
    %v1233 = vld [vmem:[#allocation7 + $0x30] sm:$0xf]
    %v1234 = vld [vmem:[#allocation7 + $0x34] sm:$0xf]
    %v1235 = vld [vmem:[#allocation7 + $0x38] sm:$0xf]
    %v1236 = vld [vmem:[#allocation7 + $0x3c] sm:$0xf]
    %v1237 = vld [vmem:[#allocation7 + $0x40] sm:$0xf]
    %v1238 = vld [vmem:[#allocation7 + $0x44] sm:$0xf]
    %v1239 = vld [vmem:[#allocation7 + $0x48] sm:$0xf]
    %v1240 = vld [vmem:[#allocation7 + $0x4c] sm:$0xf]
    %v1241 = vld [vmem:[#allocation7 + $0x50] sm:$0xf]
    %v1242 = vld [vmem:[#allocation7 + $0x54] sm:$0xf]
    %v1243 = vld [vmem:[#allocation7 + $0x58] sm:$0xf]
    %v1244 = vld [vmem:[#allocation7 + $0x5c] sm:$0xf]
    %v1245 = vld [vmem:[#allocation7 + $0x60] sm:$0xf]
    %v1246 = vld [vmem:[#allocation7 + $0x64] sm:$0xf]
    %v1247 = vld [vmem:[#allocation7 + $0x68] sm:$0xf]
    %v1248 = vld [vmem:[#allocation7 + $0x6c] sm:$0xf]
    %v1249 = vld [vmem:[#allocation7 + $0x70] sm:$0xf]
    %v1250 = vld [vmem:[#allocation7 + $0x74] sm:$0xf]
    %v1251 = vld [vmem:[#allocation7 + $0x78] sm:$0xf]
    %v1252 = vld [vmem:[#allocation7 + $0x7c] sm:$0xf]
    %v1253 = vld [vmem:[#allocation7 + $0x80] sm:$0xf]
    %v1254 = vld [vmem:[#allocation7 + $0x84] sm:$0xf]
    %v1255 = vld [vmem:[#allocation7 + $0x88] sm:$0xf]
    %v1256 = vld [vmem:[#allocation7 + $0x8c] sm:$0xf]
    %v1257 = vld [vmem:[#allocation7 + $0x90] sm:$0xf]
    %v1258 = vld [vmem:[#allocation7 + $0x94] sm:$0xf]
    %v1259 = vld [vmem:[#allocation7 + $0x98] sm:$0xf]
    %v1260 = vld [vmem:[#allocation7 + $0x9c] sm:$0xf]
    %v1261 = vld [vmem:[#allocation7 + $0xa0] sm:$0xf]
    %v1262 = vld [vmem:[#allocation7 + $0xa4] sm:$0xf]
    %v1263 = vld [vmem:[#allocation7 + $0xa8] sm:$0xf]
    %v1264 = vld [vmem:[#allocation7 + $0xac] sm:$0xf]
    %v1265 = vld [vmem:[#allocation7 + $0xb0] sm:$0xf]
    %v1266 = vld [vmem:[#allocation7 + $0xb4] sm:$0xf]
    %v1267 = vld [vmem:[#allocation7 + $0xb8] sm:$0xf]
    %v1268 = vld [vmem:[#allocation7 + $0xbc] sm:$0xf]
    %v1269 = vld [vmem:[#allocation7 + $0xc0] sm:$0xf]
    %v1270 = vld [vmem:[#allocation7 + $0xc4] sm:$0xf]
    %v1271 = vld [vmem:[#allocation7 + $0xc8] sm:$0xf]
    %v1272 = vld [vmem:[#allocation7 + $0xcc] sm:$0xf]
    %v1273 = vld [vmem:[#allocation7 + $0xd0] sm:$0xf]
    %v1274 = vld [vmem:[#allocation7 + $0xd4] sm:$0xf]
    %v1275 = vld [vmem:[#allocation7 + $0xd8] sm:$0xf]
    %v1276 = vld [vmem:[#allocation7 + $0xdc] sm:$0xf]
    %v1277 = vld [vmem:[#allocation7 + $0xe0] sm:$0xf]
    %v1278 = vld [vmem:[#allocation7 + $0xe4] sm:$0xf]
    %v1279 = vld [vmem:[#allocation7 + $0xe8] sm:$0xf]
    %v1280 = vld [vmem:[#allocation7 + $0xec] sm:$0xf]
    %v1281 = vld [vmem:[#allocation7 + $0xf0] sm:$0xf]
    %v1282 = vld [vmem:[#allocation7 + $0xf4] sm:$0xf]
    %v1283 = vld [vmem:[#allocation7 + $0xf8] sm:$0xf]
    %v1284 = vld [vmem:[#allocation7 + $0xfc] sm:$0xf]
    %v1287 = vunpack.c.l.b16 %v1217
    %v1288 = vunpack.c.h.b16 %v1217
    %v1289 = vunpack.c.l.b16 %v1218
    %v1290 = vunpack.c.h.b16 %v1218
    %v1291 = vpack.c.b16 %v1287, %v1287
    %v1292 = vpack.c.b16 %v1288, %v1288
    %v1293 = vpack.c.b16 %v1289, %v1289
    %v1294 = vpack.c.b16 %v1290, %v1290
    %v1363 = vunpack.c.l.b16 %v1221
    %v1364 = vunpack.c.l.b16 %v1222
    %v1365 = vunpack.c.l.b16 %v1223
    %v1366 = vunpack.c.l.b16 %v1224
    %v1367 = vunpack.c.l.b16 %v1225
    %v1368 = vunpack.c.l.b16 %v1226
    %v1369 = vunpack.c.l.b16 %v1227
    %v1370 = vunpack.c.l.b16 %v1228
    %v1371 = vunpack.c.l.b16 %v1229
    %v1372 = vunpack.c.l.b16 %v1230
    %v1373 = vunpack.c.l.b16 %v1231
    %v1374 = vunpack.c.l.b16 %v1232
    %v1375 = vunpack.c.l.b16 %v1233
    %v1376 = vunpack.c.l.b16 %v1234
    %v1377 = vunpack.c.l.b16 %v1235
    %v1378 = vunpack.c.l.b16 %v1236
    %v1379 = vunpack.c.l.b16 %v1237
    %v1380 = vunpack.c.l.b16 %v1238
    %v1381 = vunpack.c.l.b16 %v1239
    %v1382 = vunpack.c.l.b16 %v1240
    %v1383 = vunpack.c.l.b16 %v1241
    %v1384 = vunpack.c.l.b16 %v1242
    %v1385 = vunpack.c.l.b16 %v1243
    %v1386 = vunpack.c.l.b16 %v1244
    %v1387 = vunpack.c.l.b16 %v1245
    %v1388 = vunpack.c.l.b16 %v1246
    %v1389 = vunpack.c.l.b16 %v1247
    %v1390 = vunpack.c.l.b16 %v1248
    %v1391 = vunpack.c.l.b16 %v1249
    %v1392 = vunpack.c.l.b16 %v1250
    %v1393 = vunpack.c.l.b16 %v1251
    %v1394 = vunpack.c.l.b16 %v1252
    %v1395 = vunpack.c.l.b16 %v1253
    %v1396 = vunpack.c.l.b16 %v1254
    %v1397 = vunpack.c.l.b16 %v1255
    %v1398 = vunpack.c.l.b16 %v1256
    %v1399 = vunpack.c.l.b16 %v1257
    %v1400 = vunpack.c.l.b16 %v1258
    %v1401 = vunpack.c.l.b16 %v1259
    %v1402 = vunpack.c.l.b16 %v1260
    %v1403 = vunpack.c.l.b16 %v1261
    %v1404 = vunpack.c.l.b16 %v1262
    %v1405 = vunpack.c.l.b16 %v1263
    %v1406 = vunpack.c.l.b16 %v1264
    %v1407 = vunpack.c.l.b16 %v1265
    %v1408 = vunpack.c.l.b16 %v1266
    %v1409 = vunpack.c.l.b16 %v1267
    %v1410 = vunpack.c.l.b16 %v1268
    %v1411 = vunpack.c.l.b16 %v1269
    %v1412 = vunpack.c.l.b16 %v1270
    %v1413 = vunpack.c.l.b16 %v1271
    %v1414 = vunpack.c.l.b16 %v1272
    %v1415 = vunpack.c.l.b16 %v1273
    %v1416 = vunpack.c.l.b16 %v1274
    %v1417 = vunpack.c.l.b16 %v1275
    %v1418 = vunpack.c.l.b16 %v1276
    %v1419 = vunpack.c.l.b16 %v1277
    %v1420 = vunpack.c.l.b16 %v1278
    %v1421 = vunpack.c.l.b16 %v1279
    %v1422 = vunpack.c.l.b16 %v1280
    %v1423 = vunpack.c.l.b16 %v1281
    %v1424 = vunpack.c.l.b16 %v1282
    %v1425 = vunpack.c.l.b16 %v1283
    %v1426 = vunpack.c.l.b16 %v1284
    %v1427 = vpack.c.b16 %v1364, %v1363
    %v1428 = vpack.c.b16 %v1366, %v1365
    %v1429 = vpack.c.b16 %v1368, %v1367
    %v1430 = vpack.c.b16 %v1370, %v1369
    %v1431 = vpack.c.b16 %v1372, %v1371
    %v1432 = vpack.c.b16 %v1374, %v1373
    %v1433 = vpack.c.b16 %v1376, %v1375
    %v1434 = vpack.c.b16 %v1378, %v1377
    %v1435 = vpack.c.b16 %v1380, %v1379
    %v1436 = vpack.c.b16 %v1382, %v1381
    %v1437 = vpack.c.b16 %v1384, %v1383
    %v1438 = vpack.c.b16 %v1386, %v1385
    %v1439 = vpack.c.b16 %v1388, %v1387
    %v1440 = vpack.c.b16 %v1390, %v1389
    %v1441 = vpack.c.b16 %v1392, %v1391
    %v1442 = vpack.c.b16 %v1394, %v1393
    %v1443 = vpack.c.b16 %v1396, %v1395
    %v1444 = vpack.c.b16 %v1398, %v1397
    %v1445 = vpack.c.b16 %v1400, %v1399
    %v1446 = vpack.c.b16 %v1402, %v1401
    %v1447 = vpack.c.b16 %v1404, %v1403
    %v1448 = vpack.c.b16 %v1406, %v1405
    %v1449 = vpack.c.b16 %v1408, %v1407
    %v1450 = vpack.c.b16 %v1410, %v1409
    %v1451 = vpack.c.b16 %v1412, %v1411
    %v1452 = vpack.c.b16 %v1414, %v1413
    %v1453 = vpack.c.b16 %v1416, %v1415
    %v1454 = vpack.c.b16 %v1418, %v1417
    %v1455 = vpack.c.b16 %v1420, %v1419
    %v1456 = vpack.c.b16 %v1422, %v1421
    %v1457 = vpack.c.b16 %v1424, %v1423
    %v1458 = vpack.c.b16 %v1426, %v1425
    %1491 = vmatpush.bf16.msra.mxu0 %v1434
    %1492 = vmatpush.bf16.msra.mxu0 %v1433
    %1493 = vmatpush.bf16.msra.mxu0 %v1432
    %1494 = vmatpush.bf16.msra.mxu0 %v1431
    %1495 = vmatpush.bf16.msra.mxu0 %v1430
    %1496 = vmatpush.bf16.msra.mxu0 %v1429
    %1497 = vmatpush.bf16.msra.mxu0 %v1428
    %1498 = vmatpush.bf16.msra.mxu0 %v1427
    %1499 = vmatmul.bf16.gmra.mxu0 %v1291
    %v1500 = vpop.f32.mrf.mxu0
    %v1501 = vadd.f32 0.0, %v1500
    %v1502 = vpop.f32.mrf.mxu0
    %1503 = vdwg.mxu0
    %1504 = vmatpush.bf16.msra.mxu0 %v1442
    %1505 = vmatpush.bf16.msra.mxu0 %v1441
    %1506 = vmatpush.bf16.msra.mxu0 %v1440
    %1507 = vmatpush.bf16.msra.mxu0 %v1439
    %1508 = vmatpush.bf16.msra.mxu0 %v1438
    %1509 = vmatpush.bf16.msra.mxu0 %v1437
    %1510 = vmatpush.bf16.msra.mxu0 %v1436
    %1511 = vmatpush.bf16.msra.mxu0 %v1435
    %1512 = vmatmul.bf16.gmra.mxu0 %v1292
    %v1513 = vpop.f32.mrf.mxu0
    %v1514 = vadd.f32 %v1501, %v1513
    %v1515 = vpop.f32.mrf.mxu0
    %1516 = vdwg.mxu0
    %1517 = vmatpush.bf16.msra.mxu0 %v1450
    %1518 = vmatpush.bf16.msra.mxu0 %v1449
    %1519 = vmatpush.bf16.msra.mxu0 %v1448
    %1520 = vmatpush.bf16.msra.mxu0 %v1447
    %1521 = vmatpush.bf16.msra.mxu0 %v1446
    %1522 = vmatpush.bf16.msra.mxu0 %v1445
    %1523 = vmatpush.bf16.msra.mxu0 %v1444
    %1524 = vmatpush.bf16.msra.mxu0 %v1443
    %1525 = vmatmul.bf16.gmra.mxu0 %v1293
    %v1526 = vpop.f32.mrf.mxu0
    %v1527 = vadd.f32 %v1514, %v1526
    %v1528 = vpop.f32.mrf.mxu0
    %1529 = vdwg.mxu0
    %1530 = vmatpush.bf16.msra.mxu0 %v1458
    %1531 = vmatpush.bf16.msra.mxu0 %v1457
    %1532 = vmatpush.bf16.msra.mxu0 %v1456
    %1533 = vmatpush.bf16.msra.mxu0 %v1455
    %1534 = vmatpush.bf16.msra.mxu0 %v1454
    %1535 = vmatpush.bf16.msra.mxu0 %v1453
    %1536 = vmatpush.bf16.msra.mxu0 %v1452
    %1537 = vmatpush.bf16.msra.mxu0 %v1451
    %1538 = vmatmul.bf16.gmra.mxu0 %v1294
    %v1539 = vpop.f32.mrf.mxu0
    %v1540 = vadd.f32 %v1527, %v1539
    %v1541 = vpop.f32.mrf.mxu0
    %1542 = vdwg.mxu0
    %v1543 = vld [vmem:[#allocation7 + $0x100] sm:$0xf]
    %v1544 = vld [vmem:[#allocation7 + $0x104] sm:$0xf]
    %v1545 = vld [vmem:[#allocation7 + $0x108] sm:$0xf]
    %v1546 = vld [vmem:[#allocation7 + $0x10c] sm:$0xf]
    %v1547 = vld [vmem:[#allocation7 + $0x110] sm:$0xf]
    %v1548 = vld [vmem:[#allocation7 + $0x114] sm:$0xf]
    %v1549 = vld [vmem:[#allocation7 + $0x118] sm:$0xf]
    %v1550 = vld [vmem:[#allocation7 + $0x11c] sm:$0xf]
    %v1551 = vld [vmem:[#allocation7 + $0x120] sm:$0xf]
    %v1552 = vld [vmem:[#allocation7 + $0x124] sm:$0xf]
    %v1553 = vld [vmem:[#allocation7 + $0x128] sm:$0xf]
    %v1554 = vld [vmem:[#allocation7 + $0x12c] sm:$0xf]
    %v1555 = vld [vmem:[#allocation7 + $0x130] sm:$0xf]
    %v1556 = vld [vmem:[#allocation7 + $0x134] sm:$0xf]
    %v1557 = vld [vmem:[#allocation7 + $0x138] sm:$0xf]
    %v1558 = vld [vmem:[#allocation7 + $0x13c] sm:$0xf]
    %v1559 = vld [vmem:[#allocation7 + $0x140] sm:$0xf]
    %v1560 = vld [vmem:[#allocation7 + $0x144] sm:$0xf]
    %v1561 = vld [vmem:[#allocation7 + $0x148] sm:$0xf]
    %v1562 = vld [vmem:[#allocation7 + $0x14c] sm:$0xf]
    %v1563 = vld [vmem:[#allocation7 + $0x150] sm:$0xf]
    %v1564 = vld [vmem:[#allocation7 + $0x154] sm:$0xf]
    %v1565 = vld [vmem:[#allocation7 + $0x158] sm:$0xf]
    %v1566 = vld [vmem:[#allocation7 + $0x15c] sm:$0xf]
    %v1567 = vld [vmem:[#allocation7 + $0x160] sm:$0xf]
    %v1568 = vld [vmem:[#allocation7 + $0x164] sm:$0xf]
    %v1569 = vld [vmem:[#allocation7 + $0x168] sm:$0xf]
    %v1570 = vld [vmem:[#allocation7 + $0x16c] sm:$0xf]
    %v1571 = vld [vmem:[#allocation7 + $0x170] sm:$0xf]
    %v1572 = vld [vmem:[#allocation7 + $0x174] sm:$0xf]
    %v1573 = vld [vmem:[#allocation7 + $0x178] sm:$0xf]
    %v1574 = vld [vmem:[#allocation7 + $0x17c] sm:$0xf]
    %v1575 = vld [vmem:[#allocation7 + $0x180] sm:$0xf]
    %v1576 = vld [vmem:[#allocation7 + $0x184] sm:$0xf]
    %v1577 = vld [vmem:[#allocation7 + $0x188] sm:$0xf]
    %v1578 = vld [vmem:[#allocation7 + $0x18c] sm:$0xf]
    %v1579 = vld [vmem:[#allocation7 + $0x190] sm:$0xf]
    %v1580 = vld [vmem:[#allocation7 + $0x194] sm:$0xf]
    %v1581 = vld [vmem:[#allocation7 + $0x198] sm:$0xf]
    %v1582 = vld [vmem:[#allocation7 + $0x19c] sm:$0xf]
    %v1583 = vld [vmem:[#allocation7 + $0x1a0] sm:$0xf]
    %v1584 = vld [vmem:[#allocation7 + $0x1a4] sm:$0xf]
    %v1585 = vld [vmem:[#allocation7 + $0x1a8] sm:$0xf]
    %v1586 = vld [vmem:[#allocation7 + $0x1ac] sm:$0xf]
    %v1587 = vld [vmem:[#allocation7 + $0x1b0] sm:$0xf]
    %v1588 = vld [vmem:[#allocation7 + $0x1b4] sm:$0xf]
    %v1589 = vld [vmem:[#allocation7 + $0x1b8] sm:$0xf]
    %v1590 = vld [vmem:[#allocation7 + $0x1bc] sm:$0xf]
    %v1591 = vld [vmem:[#allocation7 + $0x1c0] sm:$0xf]
    %v1592 = vld [vmem:[#allocation7 + $0x1c4] sm:$0xf]
    %v1593 = vld [vmem:[#allocation7 + $0x1c8] sm:$0xf]
    %v1594 = vld [vmem:[#allocation7 + $0x1cc] sm:$0xf]
    %v1595 = vld [vmem:[#allocation7 + $0x1d0] sm:$0xf]
    %v1596 = vld [vmem:[#allocation7 + $0x1d4] sm:$0xf]
    %v1597 = vld [vmem:[#allocation7 + $0x1d8] sm:$0xf]
    %v1598 = vld [vmem:[#allocation7 + $0x1dc] sm:$0xf]
    %v1599 = vld [vmem:[#allocation7 + $0x1e0] sm:$0xf]
    %v1600 = vld [vmem:[#allocation7 + $0x1e4] sm:$0xf]
    %v1601 = vld [vmem:[#allocation7 + $0x1e8] sm:$0xf]
    %v1602 = vld [vmem:[#allocation7 + $0x1ec] sm:$0xf]
    %v1603 = vld [vmem:[#allocation7 + $0x1f0] sm:$0xf]
    %v1604 = vld [vmem:[#allocation7 + $0x1f4] sm:$0xf]
    %v1605 = vld [vmem:[#allocation7 + $0x1f8] sm:$0xf]
    %v1606 = vld [vmem:[#allocation7 + $0x1fc] sm:$0xf]
    %v1609 = vunpack.c.l.b16 %v1219
    %v1610 = vunpack.c.h.b16 %v1219
    %v1611 = vunpack.c.l.b16 %v1220
    %v1612 = vunpack.c.h.b16 %v1220
    %v1613 = vpack.c.b16 %v1609, %v1609
    %v1614 = vpack.c.b16 %v1610, %v1610
    %v1615 = vpack.c.b16 %v1611, %v1611
    %v1616 = vpack.c.b16 %v1612, %v1612
    %v1685 = vunpack.c.l.b16 %v1543
    %v1686 = vunpack.c.l.b16 %v1544
    %v1687 = vunpack.c.l.b16 %v1545
    %v1688 = vunpack.c.l.b16 %v1546
    %v1689 = vunpack.c.l.b16 %v1547
    %v1690 = vunpack.c.l.b16 %v1548
    %v1691 = vunpack.c.l.b16 %v1549
    %v1692 = vunpack.c.l.b16 %v1550
    %v1693 = vunpack.c.l.b16 %v1551
    %v1694 = vunpack.c.l.b16 %v1552
    %v1695 = vunpack.c.l.b16 %v1553
    %v1696 = vunpack.c.l.b16 %v1554
    %v1697 = vunpack.c.l.b16 %v1555
    %v1698 = vunpack.c.l.b16 %v1556
    %v1699 = vunpack.c.l.b16 %v1557
    %v1700 = vunpack.c.l.b16 %v1558
    %v1701 = vunpack.c.l.b16 %v1559
    %v1702 = vunpack.c.l.b16 %v1560
    %v1703 = vunpack.c.l.b16 %v1561
    %v1704 = vunpack.c.l.b16 %v1562
    %v1705 = vunpack.c.l.b16 %v1563
    %v1706 = vunpack.c.l.b16 %v1564
    %v1707 = vunpack.c.l.b16 %v1565
    %v1708 = vunpack.c.l.b16 %v1566
    %v1709 = vunpack.c.l.b16 %v1567
    %v1710 = vunpack.c.l.b16 %v1568
    %v1711 = vunpack.c.l.b16 %v1569
    %v1712 = vunpack.c.l.b16 %v1570
    %v1713 = vunpack.c.l.b16 %v1571
    %v1714 = vunpack.c.l.b16 %v1572
    %v1715 = vunpack.c.l.b16 %v1573
    %v1716 = vunpack.c.l.b16 %v1574
    %v1717 = vunpack.c.l.b16 %v1575
    %v1718 = vunpack.c.l.b16 %v1576
    %v1719 = vunpack.c.l.b16 %v1577
    %v1720 = vunpack.c.l.b16 %v1578
    %v1721 = vunpack.c.l.b16 %v1579
    %v1722 = vunpack.c.l.b16 %v1580
    %v1723 = vunpack.c.l.b16 %v1581
    %v1724 = vunpack.c.l.b16 %v1582
    %v1725 = vunpack.c.l.b16 %v1583
    %v1726 = vunpack.c.l.b16 %v1584
    %v1727 = vunpack.c.l.b16 %v1585
    %v1728 = vunpack.c.l.b16 %v1586
    %v1729 = vunpack.c.l.b16 %v1587
    %v1730 = vunpack.c.l.b16 %v1588
    %v1731 = vunpack.c.l.b16 %v1589
    %v1732 = vunpack.c.l.b16 %v1590
    %v1733 = vunpack.c.l.b16 %v1591
    %v1734 = vunpack.c.l.b16 %v1592
    %v1735 = vunpack.c.l.b16 %v1593
    %v1736 = vunpack.c.l.b16 %v1594
    %v1737 = vunpack.c.l.b16 %v1595
    %v1738 = vunpack.c.l.b16 %v1596
    %v1739 = vunpack.c.l.b16 %v1597
    %v1740 = vunpack.c.l.b16 %v1598
    %v1741 = vunpack.c.l.b16 %v1599
    %v1742 = vunpack.c.l.b16 %v1600
    %v1743 = vunpack.c.l.b16 %v1601
    %v1744 = vunpack.c.l.b16 %v1602
    %v1745 = vunpack.c.l.b16 %v1603
    %v1746 = vunpack.c.l.b16 %v1604
    %v1747 = vunpack.c.l.b16 %v1605
    %v1748 = vunpack.c.l.b16 %v1606
    %v1749 = vpack.c.b16 %v1686, %v1685
    %v1750 = vpack.c.b16 %v1688, %v1687
    %v1751 = vpack.c.b16 %v1690, %v1689
    %v1752 = vpack.c.b16 %v1692, %v1691
    %v1753 = vpack.c.b16 %v1694, %v1693
    %v1754 = vpack.c.b16 %v1696, %v1695
    %v1755 = vpack.c.b16 %v1698, %v1697
    %v1756 = vpack.c.b16 %v1700, %v1699
    %v1757 = vpack.c.b16 %v1702, %v1701
    %v1758 = vpack.c.b16 %v1704, %v1703
    %v1759 = vpack.c.b16 %v1706, %v1705
    %v1760 = vpack.c.b16 %v1708, %v1707
    %v1761 = vpack.c.b16 %v1710, %v1709
    %v1762 = vpack.c.b16 %v1712, %v1711
    %v1763 = vpack.c.b16 %v1714, %v1713
    %v1764 = vpack.c.b16 %v1716, %v1715
    %v1765 = vpack.c.b16 %v1718, %v1717
    %v1766 = vpack.c.b16 %v1720, %v1719
    %v1767 = vpack.c.b16 %v1722, %v1721
    %v1768 = vpack.c.b16 %v1724, %v1723
    %v1769 = vpack.c.b16 %v1726, %v1725
    %v1770 = vpack.c.b16 %v1728, %v1727
    %v1771 = vpack.c.b16 %v1730, %v1729
    %v1772 = vpack.c.b16 %v1732, %v1731
    %v1773 = vpack.c.b16 %v1734, %v1733
    %v1774 = vpack.c.b16 %v1736, %v1735
    %v1775 = vpack.c.b16 %v1738, %v1737
    %v1776 = vpack.c.b16 %v1740, %v1739
    %v1777 = vpack.c.b16 %v1742, %v1741
    %v1778 = vpack.c.b16 %v1744, %v1743
    %v1779 = vpack.c.b16 %v1746, %v1745
    %v1780 = vpack.c.b16 %v1748, %v1747
    %1813 = vmatpush.bf16.msra.mxu0 %v1756
    %1814 = vmatpush.bf16.msra.mxu0 %v1755
    %1815 = vmatpush.bf16.msra.mxu0 %v1754
    %1816 = vmatpush.bf16.msra.mxu0 %v1753
    %1817 = vmatpush.bf16.msra.mxu0 %v1752
    %1818 = vmatpush.bf16.msra.mxu0 %v1751
    %1819 = vmatpush.bf16.msra.mxu0 %v1750
    %1820 = vmatpush.bf16.msra.mxu0 %v1749
    %1821 = vmatmul.bf16.gmra.mxu0 %v1613
    %v1822 = vpop.f32.mrf.mxu0
    %v1823 = vadd.f32 0.0, %v1822
    %v1824 = vpop.f32.mrf.mxu0
    %1825 = vdwg.mxu0
    %1826 = vmatpush.bf16.msra.mxu0 %v1764
    %1827 = vmatpush.bf16.msra.mxu0 %v1763
    %1828 = vmatpush.bf16.msra.mxu0 %v1762
    %1829 = vmatpush.bf16.msra.mxu0 %v1761
    %1830 = vmatpush.bf16.msra.mxu0 %v1760
    %1831 = vmatpush.bf16.msra.mxu0 %v1759
    %1832 = vmatpush.bf16.msra.mxu0 %v1758
    %1833 = vmatpush.bf16.msra.mxu0 %v1757
    %1834 = vmatmul.bf16.gmra.mxu0 %v1614
    %v1835 = vpop.f32.mrf.mxu0
    %v1836 = vadd.f32 %v1823, %v1835
    %v1837 = vpop.f32.mrf.mxu0
    %1838 = vdwg.mxu0
    %1839 = vmatpush.bf16.msra.mxu0 %v1772
    %1840 = vmatpush.bf16.msra.mxu0 %v1771
    %1841 = vmatpush.bf16.msra.mxu0 %v1770
    %1842 = vmatpush.bf16.msra.mxu0 %v1769
    %1843 = vmatpush.bf16.msra.mxu0 %v1768
    %1844 = vmatpush.bf16.msra.mxu0 %v1767
    %1845 = vmatpush.bf16.msra.mxu0 %v1766
    %1846 = vmatpush.bf16.msra.mxu0 %v1765
    %1847 = vmatmul.bf16.gmra.mxu0 %v1615
    %v1848 = vpop.f32.mrf.mxu0
    %v1849 = vadd.f32 %v1836, %v1848
    %v1850 = vpop.f32.mrf.mxu0
    %1851 = vdwg.mxu0
    %1852 = vmatpush.bf16.msra.mxu0 %v1780
    %1853 = vmatpush.bf16.msra.mxu0 %v1779
    %1854 = vmatpush.bf16.msra.mxu0 %v1778
    %1855 = vmatpush.bf16.msra.mxu0 %v1777
    %1856 = vmatpush.bf16.msra.mxu0 %v1776
    %1857 = vmatpush.bf16.msra.mxu0 %v1775
    %1858 = vmatpush.bf16.msra.mxu0 %v1774
    %1859 = vmatpush.bf16.msra.mxu0 %v1773
    %1860 = vmatmul.bf16.gmra.mxu0 %v1616
    %v1861 = vpop.f32.mrf.mxu0
    %v1862 = vadd.f32 %v1849, %v1861
    %v1863 = vpop.f32.mrf.mxu0
    %1864 = vdwg.mxu0
    %s1865 = scalar_lea.vmem [#allocation8], 2
    %v1866 = vld [vmem:[%s1865] ss:$8 sm:$0x3]
    %s1867 = scalar_lea.vmem [#allocation8], 18
    %v1868 = vld [vmem:[%s1867] ss:$8 sm:$0x3]
    %v1870 = vperm.slane %v1866, 0
    %v1871 = vperm.slane %v1866, 1
    %v1874 = vmul.f32 %v1540, %v1870
    %v1875 = vmul.f32 %v1862, %v1871
    %v1877 = vperm.slane %v1868, 0
    %v1878 = vperm.slane %v1868, 1
    %v1881 = vadd.f32 %v1874, %v1877
    %v1882 = vadd.f32 %v1875, %v1878
    %v1883 = vmax.f32 %v1881, 0.0
    %v1884 = vmax.f32 %v1882, 0.0
    %v1885 = vld [vmem:[#allocation8 + $0x22] ss:$0 sm:$0xff]
    %v1886 = vpack.c.bf16 %v1883, %v1883
    %v1887 = vpack.c.bf16 %v1884, %v1884
    %v1888 = vld [vmem:[#allocation7 + $0x200] sm:$0xf]
    %v1889 = vld [vmem:[#allocation7 + $0x204] sm:$0xf]
    %v1890 = vld [vmem:[#allocation7 + $0x208] sm:$0xf]
    %v1891 = vld [vmem:[#allocation7 + $0x20c] sm:$0xf]
    %v1892 = vld [vmem:[#allocation7 + $0x210] sm:$0xf]
    %v1893 = vld [vmem:[#allocation7 + $0x214] sm:$0xf]
    %v1894 = vld [vmem:[#allocation7 + $0x218] sm:$0xf]
    %v1895 = vld [vmem:[#allocation7 + $0x21c] sm:$0xf]
    %v1896 = vld [vmem:[#allocation7 + $0x220] sm:$0xf]
    %v1897 = vld [vmem:[#allocation7 + $0x224] sm:$0xf]
    %v1898 = vld [vmem:[#allocation7 + $0x228] sm:$0xf]
    %v1899 = vld [vmem:[#allocation7 + $0x22c] sm:$0xf]
    %v1900 = vld [vmem:[#allocation7 + $0x230] sm:$0xf]
    %v1901 = vld [vmem:[#allocation7 + $0x234] sm:$0xf]
    %v1902 = vld [vmem:[#allocation7 + $0x238] sm:$0xf]
    %v1903 = vld [vmem:[#allocation7 + $0x23c] sm:$0xf]
    %v1904 = vld [vmem:[#allocation7 + $0x240] sm:$0xf]
    %v1905 = vld [vmem:[#allocation7 + $0x244] sm:$0xf]
    %v1906 = vld [vmem:[#allocation7 + $0x248] sm:$0xf]
    %v1907 = vld [vmem:[#allocation7 + $0x24c] sm:$0xf]
    %v1908 = vld [vmem:[#allocation7 + $0x250] sm:$0xf]
    %v1909 = vld [vmem:[#allocation7 + $0x254] sm:$0xf]
    %v1910 = vld [vmem:[#allocation7 + $0x258] sm:$0xf]
    %v1911 = vld [vmem:[#allocation7 + $0x25c] sm:$0xf]
    %v1912 = vld [vmem:[#allocation7 + $0x260] sm:$0xf]
    %v1913 = vld [vmem:[#allocation7 + $0x264] sm:$0xf]
    %v1914 = vld [vmem:[#allocation7 + $0x268] sm:$0xf]
    %v1915 = vld [vmem:[#allocation7 + $0x26c] sm:$0xf]
    %v1916 = vld [vmem:[#allocation7 + $0x270] sm:$0xf]
    %v1917 = vld [vmem:[#allocation7 + $0x274] sm:$0xf]
    %v1918 = vld [vmem:[#allocation7 + $0x278] sm:$0xf]
    %v1919 = vld [vmem:[#allocation7 + $0x27c] sm:$0xf]
    %v1952 = vunpack.c.l.b16 %v1888
    %v1953 = vunpack.c.l.b16 %v1889
    %v1954 = vunpack.c.l.b16 %v1890
    %v1955 = vunpack.c.l.b16 %v1891
    %v1956 = vunpack.c.l.b16 %v1892
    %v1957 = vunpack.c.l.b16 %v1893
    %v1958 = vunpack.c.l.b16 %v1894
    %v1959 = vunpack.c.l.b16 %v1895
    %v1960 = vunpack.c.l.b16 %v1896
    %v1961 = vunpack.c.l.b16 %v1897
    %v1962 = vunpack.c.l.b16 %v1898
    %v1963 = vunpack.c.l.b16 %v1899
    %v1964 = vunpack.c.l.b16 %v1900
    %v1965 = vunpack.c.l.b16 %v1901
    %v1966 = vunpack.c.l.b16 %v1902
    %v1967 = vunpack.c.l.b16 %v1903
    %v1968 = vunpack.c.l.b16 %v1904
    %v1969 = vunpack.c.l.b16 %v1905
    %v1970 = vunpack.c.l.b16 %v1906
    %v1971 = vunpack.c.l.b16 %v1907
    %v1972 = vunpack.c.l.b16 %v1908
    %v1973 = vunpack.c.l.b16 %v1909
    %v1974 = vunpack.c.l.b16 %v1910
    %v1975 = vunpack.c.l.b16 %v1911
    %v1976 = vunpack.c.l.b16 %v1912
    %v1977 = vunpack.c.l.b16 %v1913
    %v1978 = vunpack.c.l.b16 %v1914
    %v1979 = vunpack.c.l.b16 %v1915
    %v1980 = vunpack.c.l.b16 %v1916
    %v1981 = vunpack.c.l.b16 %v1917
    %v1982 = vunpack.c.l.b16 %v1918
    %v1983 = vunpack.c.l.b16 %v1919
    %v1984 = vpack.c.b16 %v1953, %v1952
    %v1985 = vpack.c.b16 %v1955, %v1954
    %v1986 = vpack.c.b16 %v1957, %v1956
    %v1987 = vpack.c.b16 %v1959, %v1958
    %v1988 = vpack.c.b16 %v1961, %v1960
    %v1989 = vpack.c.b16 %v1963, %v1962
    %v1990 = vpack.c.b16 %v1965, %v1964
    %v1991 = vpack.c.b16 %v1967, %v1966
    %v1992 = vpack.c.b16 %v1969, %v1968
    %v1993 = vpack.c.b16 %v1971, %v1970
    %v1994 = vpack.c.b16 %v1973, %v1972
    %v1995 = vpack.c.b16 %v1975, %v1974
    %v1996 = vpack.c.b16 %v1977, %v1976
    %v1997 = vpack.c.b16 %v1979, %v1978
    %v1998 = vpack.c.b16 %v1981, %v1980
    %v1999 = vpack.c.b16 %v1983, %v1982
    %2016 = vmatpush.bf16.msra.mxu0 %v1991
    %2017 = vmatpush.bf16.msra.mxu0 %v1990
    %2018 = vmatpush.bf16.msra.mxu0 %v1989
    %2019 = vmatpush.bf16.msra.mxu0 %v1988
    %2020 = vmatpush.bf16.msra.mxu0 %v1987
    %2021 = vmatpush.bf16.msra.mxu0 %v1986
    %2022 = vmatpush.bf16.msra.mxu0 %v1985
    %2023 = vmatpush.bf16.msra.mxu0 %v1984
    %2024 = vmatmul.bf16.gmra.mxu0 %v1886
    %v2025 = vpop.f32.mrf.mxu0
    %v2026 = vadd.f32 %v1885, %v2025
    %v2027 = vpop.f32.mrf.mxu0
    %2028 = vdwg.mxu0
    %2029 = vmatpush.bf16.msra.mxu0 %v1999
    %2030 = vmatpush.bf16.msra.mxu0 %v1998
    %2031 = vmatpush.bf16.msra.mxu0 %v1997
    %2032 = vmatpush.bf16.msra.mxu0 %v1996
    %2033 = vmatpush.bf16.msra.mxu0 %v1995
    %2034 = vmatpush.bf16.msra.mxu0 %v1994
    %2035 = vmatpush.bf16.msra.mxu0 %v1993
    %2036 = vmatpush.bf16.msra.mxu0 %v1992
    %2037 = vmatmul.bf16.gmra.mxu0 %v1887
    %v2038 = vpop.f32.mrf.mxu0
    %v2039 = vadd.f32 %v2026, %v2038
    %v2040 = vpop.f32.mrf.mxu0
    %2041 = vdwg.mxu0
    %v2042 = vld [vmem:[#allocation8 + $0x2a] ss:$0 sm:$0xff]
    %v2043 = vpack.c.bf16 %v2039, %v2039
    %v2044 = vld [vmem:[#allocation7 + $0x280] sm:$0xf]
    %v2045 = vld [vmem:[#allocation7 + $0x284] sm:$0xf]
    %v2046 = vld [vmem:[#allocation7 + $0x288] sm:$0xf]
    %v2047 = vld [vmem:[#allocation7 + $0x28c] sm:$0xf]
    %v2048 = vld [vmem:[#allocation7 + $0x290] sm:$0xf]
    %v2049 = vld [vmem:[#allocation7 + $0x294] sm:$0xf]
    %v2050 = vld [vmem:[#allocation7 + $0x298] sm:$0xf]
    %v2051 = vld [vmem:[#allocation7 + $0x29c] sm:$0xf]
    %v2052 = vld [vmem:[#allocation7 + $0x2a0] sm:$0xf]
    %v2053 = vld [vmem:[#allocation7 + $0x2a4] sm:$0xf]
    %v2054 = vld [vmem:[#allocation7 + $0x2a8] sm:$0xf]
    %v2055 = vld [vmem:[#allocation7 + $0x2ac] sm:$0xf]
    %v2056 = vld [vmem:[#allocation7 + $0x2b0] sm:$0xf]
    %v2057 = vld [vmem:[#allocation7 + $0x2b4] sm:$0xf]
    %v2058 = vld [vmem:[#allocation7 + $0x2b8] sm:$0xf]
    %v2059 = vld [vmem:[#allocation7 + $0x2bc] sm:$0xf]
    %v2076 = vunpack.c.l.b16 %v2044
    %v2077 = vunpack.c.l.b16 %v2045
    %v2078 = vunpack.c.l.b16 %v2046
    %v2079 = vunpack.c.l.b16 %v2047
    %v2080 = vunpack.c.l.b16 %v2048
    %v2081 = vunpack.c.l.b16 %v2049
    %v2082 = vunpack.c.l.b16 %v2050
    %v2083 = vunpack.c.l.b16 %v2051
    %v2084 = vunpack.c.l.b16 %v2052
    %v2085 = vunpack.c.l.b16 %v2053
    %v2086 = vunpack.c.l.b16 %v2054
    %v2087 = vunpack.c.l.b16 %v2055
    %v2088 = vunpack.c.l.b16 %v2056
    %v2089 = vunpack.c.l.b16 %v2057
    %v2090 = vunpack.c.l.b16 %v2058
    %v2091 = vunpack.c.l.b16 %v2059
    %v2092 = vpack.c.b16 %v2077, %v2076
    %v2093 = vpack.c.b16 %v2079, %v2078
    %v2094 = vpack.c.b16 %v2081, %v2080
    %v2095 = vpack.c.b16 %v2083, %v2082
    %v2096 = vpack.c.b16 %v2085, %v2084
    %v2097 = vpack.c.b16 %v2087, %v2086
    %v2098 = vpack.c.b16 %v2089, %v2088
    %v2099 = vpack.c.b16 %v2091, %v2090
    %2108 = vmatpush.bf16.msra.mxu0 %v2099
    %2109 = vmatpush.bf16.msra.mxu0 %v2098
    %2110 = vmatpush.bf16.msra.mxu0 %v2097
    %2111 = vmatpush.bf16.msra.mxu0 %v2096
    %2112 = vmatpush.bf16.msra.mxu0 %v2095
    %2113 = vmatpush.bf16.msra.mxu0 %v2094
    %2114 = vmatpush.bf16.msra.mxu0 %v2093
    %2115 = vmatpush.bf16.msra.mxu0 %v2092
    %2116 = vmatmul.bf16.gmra.mxu0 %v2043
    %v2117 = vpop.f32.mrf.mxu0
    %v2118 = vadd.f32 %v2042, %v2117
    %v2119 = vpop.f32.mrf.mxu0
    %2120 = vdwg.mxu0
    %vm2121 = vcmask 58368
    %2122 = vst.msk [vmem:[#allocation10] sm:$0x3] %vm2121, %v2118
    // Predicated region
    $region34: #{tpu_custom_call.1} parent=1 // pred_check
      _
    $region35: #{tpu_custom_call.1} parent=1 // pred_check_branch
      %2124 = sbr.rel (0) target = $region37
    $region36: #{tpu_custom_call.1} parent=1 // pred_region
      %2126 = vsyncadd [#allocation4], 0
      %s2128 = sshll.u32 [#allocation10], 4
      %s2129 = int_to_ptr.vmem [resolvable:$true] %s2128
      %s2130 = sshll.u32 %s4, 4
      %s2131 = int_to_ptr.hbm [resolvable:$true] %s2130
      %2133 = dma.vmem_to_hbm [thread:$0]  %s2129, 32, %s2131, [#allocation4]
    $region37: #{tpu_custom_call.1} parent=1 // pred_fallthru
      _
    // Predicated region
    $region38: #{tpu_custom_call.1} parent=1 // pred_check
      _
    $region39: #{tpu_custom_call.1} parent=1 // pred_check_branch
      %2135 = sbr.rel (0) target = $region41
    $region40: #{tpu_custom_call.1} parent=1 // pred_region
      %2137 = dma.done [#allocation4], 32
    $region41: #{tpu_custom_call.1} parent=1 // pred_fallthru
      _
    %2138 = vsyncpa [#allocation3], 1
    %2139 = vsyncpa [#allocation6], 1
    %2140 = vsyncpa [#allocation9], 1
    %2141 = vsyncpa [#allocation4], 1

</llo_original>
